<compile_context>
chip_gen: v7x
topology: tpu7x:2x2x1
jax: 0.10.0
libtpu: 0.0.40
codegen_flags: <defaults>
</compile_context>

<pallas_src>
import jax
import jax.numpy as jnp
from jax.experimental import pallas as pl
from jax.experimental.pallas import tpu as pltpu

# ----------------------- small, deterministic config -----------------------
HIDDEN = 128
NUM_HEADS = 4
NUM_KV_HEADS = 2
HEAD_DIM = HIDDEN // NUM_HEADS          # 32
GROUP = NUM_HEADS // NUM_KV_HEADS       # 2
INTERMEDIATE = 256
SEQ = 16
RMS_EPS = 1e-6
ROPE_THETA = 10000.0
ATTN_MULTIPLIER = 0.0078125             # config.attention_multiplier
RESIDUAL_MULTIPLIER = 0.22              # config.residual_multiplier
Q_SIZE = NUM_HEADS * HEAD_DIM           # 128
KV_SIZE = NUM_KV_HEADS * HEAD_DIM       # 64
HALF = HEAD_DIM // 2
NEG_BIG = -1e30                         # finite causal-mask fill


# ------------------------------ fused kernel --------------------------------
def _granite_layer_kernel(x_ref, r_ref, cos_ref, sin_ref,
                          ln1_ref, ln2_ref,
                          wqkv_ref, wo_ref, wgu_ref, wd_ref,
                          out_ref, newres_ref):
    # ---- input_layernorm (fused residual add + RMSNorm) ----
    res1 = x_ref[...] + r_ref[...]                           # [T, HIDDEN]
    var1 = jnp.mean(res1 * res1, axis=-1, keepdims=True)
    h = res1 * jax.lax.rsqrt(var1 + RMS_EPS) * ln1_ref[...]

    # ---- qkv projection (single merged matmul) ----
    qkv = jnp.dot(h, wqkv_ref[...], preferred_element_type=jnp.float32)  # [T, Q+2KV]

    cos = cos_ref[...]                                       # [T, HALF]
    sin = sin_ref[...]                                       # [T, HALF]

    def rope(x):                                             # x: [T, HEAD_DIM]
        x1 = x[:, :HALF]
        x2 = x[:, HALF:]
        return jnp.concatenate([x1 * cos - x2 * sin,
                                x2 * cos + x1 * sin], axis=-1)

    # RoPE each K head exactly once (shared by GROUP query heads).
    k_rot = [rope(qkv[:, Q_SIZE + hk * HEAD_DIM: Q_SIZE + (hk + 1) * HEAD_DIM])
             for hk in range(NUM_KV_HEADS)]
    v_heads = [qkv[:, Q_SIZE + KV_SIZE + hk * HEAD_DIM:
                      Q_SIZE + KV_SIZE + (hk + 1) * HEAD_DIM]
               for hk in range(NUM_KV_HEADS)]

    # Causal mask (shared across heads).
    row = jax.lax.broadcasted_iota(jnp.int32, (SEQ, SEQ), 0)
    col = jax.lax.broadcasted_iota(jnp.int32, (SEQ, SEQ), 1)
    causal = row >= col

    # Contract last dims of q and k without an explicit transpose.
    dn = (((1,), (1,)), ((), ()))

    attn_heads = []
    for hq in range(NUM_HEADS):                              # static unroll (4)
        q_h = rope(qkv[:, hq * HEAD_DIM:(hq + 1) * HEAD_DIM]) * ATTN_MULTIPLIER
        k_h = k_rot[hq // GROUP]
        s = jax.lax.dot_general(q_h, k_h, dn,
                                preferred_element_type=jnp.float32)  # [T, T]
        s = jnp.where(causal, s, NEG_BIG)
        m = jnp.max(s, axis=-1, keepdims=True)
        p = jnp.exp(s - m)
        # Plain divide (exact); denom cost is negligible at these shapes.
        p = p / jnp.sum(p, axis=-1, keepdims=True)
        attn_heads.append(jnp.dot(p, v_heads[hq // GROUP],
                                  preferred_element_type=jnp.float32))

    attn_out = jnp.concatenate(attn_heads, axis=-1)          # lane-dense [T, 128]

    # ---- o_proj with residual_multiplier folded in ----
    h2 = jnp.dot(attn_out, wo_ref[...],
                 preferred_element_type=jnp.float32) * RESIDUAL_MULTIPLIER

    # ---- post_attention_layernorm (fused residual add + RMSNorm) ----
    res2 = h2 + res1
    newres_ref[...] = res2
    var2 = jnp.mean(res2 * res2, axis=-1, keepdims=True)
    h3 = res2 * jax.lax.rsqrt(var2 + RMS_EPS) * ln2_ref[...]

    # ---- MLP: merged gate_up matmul -> SiLU * up -> down_proj ----
    gu = jnp.dot(h3, wgu_ref[...], preferred_element_type=jnp.float32)  # [T, 2*I]
    g = gu[:, :INTERMEDIATE]
    u = gu[:, INTERMEDIATE:]
    act = g * jax.nn.sigmoid(g) * u
    out_ref[...] = jnp.dot(act, wd_ref[...],
                           preferred_element_type=jnp.float32) * RESIDUAL_MULTIPLIER


# ------------------------------- RoPE tables --------------------------------
def rope_tables(positions):
    inv_freq = 1.0 / (ROPE_THETA ** (jnp.arange(HALF, dtype=jnp.float32) * 2.0 / HEAD_DIM))
    freqs = positions.astype(jnp.float32)[:, None] * inv_freq[None, :]   # [T, HALF]
    return jnp.cos(freqs), jnp.sin(freqs)


# ------------------------------ layer wrapper --------------------------------
def granite_decoder_layer(positions, hidden_states, params, residual=None):
    if residual is None:
        # First layer: residual = hidden_states, i.e. fused-add with zeros.
        residual = jnp.zeros_like(hidden_states)
    cos, sin = rope_tables(positions)

    vmem = pl.BlockSpec(memory_space=pltpu.MemorySpace.VMEM)
    out, new_res = pl.pallas_call(
        _granite_layer_kernel,
        in_specs=[vmem] * 10,
        out_specs=(vmem, vmem),
        out_shape=(jax.ShapeDtypeStruct((SEQ, HIDDEN), jnp.float32),
                   jax.ShapeDtypeStruct((SEQ, HIDDEN), jnp.float32)),
        compiler_params=pltpu.CompilerParams(vmem_limit_bytes=32 * 1024 * 1024),
    )(hidden_states, residual, cos, sin,
      params["input_ln"].reshape(1, -1), params["post_ln"].reshape(1, -1),
      params["wqkv"], params["wo"], params["wgu"], params["wd"])
    return out, new_res


# ----------------------------- pure-JAX reference ----------------------------
def reference_layer(positions, hidden_states, params, residual=None):
    hp = jax.lax.Precision.HIGHEST

    def rms(x, w):
        var = jnp.mean(x * x, axis=-1, keepdims=True)
        return x * jax.lax.rsqrt(var + RMS_EPS) * w

    if residual is None:
        residual = hidden_states
        h = rms(hidden_states, params["input_ln"])
    else:
        residual = hidden_states + residual
        h = rms(residual, params["input_ln"])

    qkv = jnp.dot(h, params["wqkv"], precision=hp)
    q = qkv[:, :Q_SIZE].reshape(SEQ, NUM_HEADS, HEAD_DIM)
    k = qkv[:, Q_SIZE:Q_SIZE + KV_SIZE].reshape(SEQ, NUM_KV_HEADS, HEAD_DIM)
    v = qkv[:, Q_SIZE + KV_SIZE:].reshape(SEQ, NUM_KV_HEADS, HEAD_DIM)

    cos, sin = rope_tables(positions)
    cos_b = cos[:, None, :]
    sin_b = sin[:, None, :]

    def rope(x):
        x1 = x[..., :HALF]
        x2 = x[..., HALF:]
        return jnp.concatenate([x1 * cos_b - x2 * sin_b,
                                x2 * cos_b + x1 * sin_b], axis=-1)

    q = rope(q)
    k = rope(k)

    k_full = jnp.repeat(k, GROUP, axis=1)    # [T, H, D]
    v_full = jnp.repeat(v, GROUP, axis=1)
    s = jnp.einsum("thd,shd->hts", q, k_full, precision=hp) * ATTN_MULTIPLIER
    row = jnp.arange(SEQ)[:, None]
    col = jnp.arange(SEQ)[None, :]
    s = jnp.where(row >= col, s, -jnp.inf)
    p = jax.nn.softmax(s, axis=-1)
    attn = jnp.einsum("hts,shd->thd", p, v_full, precision=hp).reshape(SEQ, Q_SIZE)
    h = jnp.dot(attn, params["wo"], precision=hp) * RESIDUAL_MULTIPLIER

    residual = h + residual
    h = rms(residual, params["post_ln"])

    gu = jnp.dot(h, params["wgu"], precision=hp)
    g = gu[:, :INTERMEDIATE]
    u = gu[:, INTERMEDIATE:]
    act = g * jax.nn.sigmoid(g) * u
    h = jnp.dot(act, params["wd"], precision=hp) * RESIDUAL_MULTIPLIER
    return h, residual


# ---------------------------------- main -------------------------------------
if __name__ == "__main__":
    key = jax.random.PRNGKey(0)
    k_h, k_qkv, k_o, k_gu, k_d, k_ln1, k_ln2 = jax.random.split(key, 7)

    hidden_states = jax.random.normal(k_h, (SEQ, HIDDEN), jnp.float32)
    positions = jnp.arange(SEQ, dtype=jnp.int32)

    wscale = 0.02
    params = {
        "input_ln": 1.0 + 0.01 * jax.random.normal(k_ln1, (HIDDEN,), jnp.float32),
        "post_ln": 1.0 + 0.01 * jax.random.normal(k_ln2, (HIDDEN,), jnp.float32),
        "wqkv": wscale * jax.random.normal(k_qkv, (HIDDEN, Q_SIZE + 2 * KV_SIZE), jnp.float32),
        "wo": wscale * jax.random.normal(k_o, (Q_SIZE, HIDDEN), jnp.float32),
        # gate_proj and up_proj merged (MergedColumnParallelLinear semantics).
        "wgu": wscale * jax.random.normal(k_gu, (HIDDEN, 2 * INTERMEDIATE), jnp.float32),
        "wd": wscale * jax.random.normal(k_d, (INTERMEDIATE, HIDDEN), jnp.float32),
    }

    # Layer call 1: residual=None path.
    out, new_res = granite_decoder_layer(positions, hidden_states, params, residual=None)
    jax.block_until_ready((out, new_res))

    ref_out, ref_res = reference_layer(positions, hidden_states, params, residual=None)
    assert jnp.allclose(out, ref_out, rtol=5e-3, atol=5e-3), (
        float(jnp.max(jnp.abs(out - ref_out))))
    assert jnp.allclose(new_res, ref_res, rtol=5e-3, atol=5e-3), (
        float(jnp.max(jnp.abs(new_res - ref_res))))

    # Layer call 2: exercises the fused-add (residual is not None) path.
    out2, res2 = granite_decoder_layer(positions, out, params, residual=new_res)
    jax.block_until_ready((out2, res2))
    ref_out2, ref_res2 = reference_layer(positions, ref_out, params, residual=ref_res)
    assert jnp.allclose(out2, ref_out2, rtol=5e-3, atol=5e-3), (
        float(jnp.max(jnp.abs(out2 - ref_out2))))
    assert jnp.allclose(res2, ref_res2, rtol=5e-3, atol=5e-3), (
        float(jnp.max(jnp.abs(res2 - ref_res2))))

    print("KERNEL_OK")
</pallas_src>

<mosaic_0001>
module attributes {stable_mosaic.version = 11 : i64} {
  func.func @_granite_layer_kernel(%arg0: memref<16x128xf32, #tpu.memory_space<vmem>>, %arg1: memref<16x128xf32, #tpu.memory_space<vmem>>, %arg2: memref<16x16xf32, #tpu.memory_space<vmem>>, %arg3: memref<16x16xf32, #tpu.memory_space<vmem>>, %arg4: memref<1x128xf32, #tpu.memory_space<vmem>>, %arg5: memref<1x128xf32, #tpu.memory_space<vmem>>, %arg6: memref<128x256xf32, #tpu.memory_space<vmem>>, %arg7: memref<128x128xf32, #tpu.memory_space<vmem>>, %arg8: memref<128x512xf32, #tpu.memory_space<vmem>>, %arg9: memref<256x128xf32, #tpu.memory_space<vmem>>, %arg10: memref<16x128xf32, #tpu.memory_space<vmem>>, %arg11: memref<16x128xf32, #tpu.memory_space<vmem>>) attributes {dimension_semantics = [], scalar_prefetch = 0 : i64, scratch_operands = 0 : i64, tpu.core_type = #tpu.core_type<tc>} {
    %c0 = arith.constant 0 : index
    %c0_0 = arith.constant 0 : index
    %0 = vector.load %arg0[%c0, %c0_0] : memref<16x128xf32, #tpu.memory_space<vmem>>, vector<16x128xf32>
    %c0_1 = arith.constant 0 : index
    %c0_2 = arith.constant 0 : index
    %1 = vector.load %arg1[%c0_1, %c0_2] : memref<16x128xf32, #tpu.memory_space<vmem>>, vector<16x128xf32>
    %2 = arith.addf %0, %1 : vector<16x128xf32>
    %3 = arith.mulf %2, %2 : vector<16x128xf32>
    %cst = arith.constant dense<0.000000e+00> : vector<16xf32>
    %4 = vector.multi_reduction <add>, %3, %cst [1] : vector<16x128xf32> to vector<16xf32>
    %5 = vector.shape_cast %4 : vector<16xf32> to vector<16x1xf32>
    %cst_3 = arith.constant 1.280000e+02 : f32
    %6 = vector.broadcast %cst_3 : f32 to vector<16x1xf32>
    %7 = arith.divf %5, %6 : vector<16x1xf32>
    %cst_4 = arith.constant 9.99999997E-7 : f32
    %8 = vector.broadcast %cst_4 : f32 to vector<16x1xf32>
    %9 = arith.addf %7, %8 : vector<16x1xf32>
    %10 = math.rsqrt %9 : vector<16x1xf32>
    %11 = vector.broadcast %10 : vector<16x1xf32> to vector<16x128xf32>
    %12 = arith.mulf %2, %11 : vector<16x128xf32>
    %c0_5 = arith.constant 0 : index
    %c0_6 = arith.constant 0 : index
    %13 = vector.load %arg4[%c0_5, %c0_6] : memref<1x128xf32, #tpu.memory_space<vmem>>, vector<1x128xf32>
    %14 = vector.broadcast %13 : vector<1x128xf32> to vector<16x128xf32>
    %15 = arith.mulf %12, %14 : vector<16x128xf32>
    %c0_7 = arith.constant 0 : index
    %c0_8 = arith.constant 0 : index
    %16 = vector.load %arg6[%c0_7, %c0_8] : memref<128x256xf32, #tpu.memory_space<vmem>>, vector<128x256xf32>
    %cst_9 = arith.constant dense<0.000000e+00> : vector<16x256xf32>
    %17 = tpu.matmul %15, %16, %cst_9 {dimension_numbers = #tpu.dot_dimension_numbers<[1], [0], [0], [1], [0, 0, 1, 1], [], []>} : vector<16x128xf32>, vector<128x256xf32>, vector<16x256xf32> -> vector<16x256xf32>
    %c0_10 = arith.constant 0 : index
    %c0_11 = arith.constant 0 : index
    %18 = vector.load %arg2[%c0_10, %c0_11] : memref<16x16xf32, #tpu.memory_space<vmem>>, vector<16x16xf32>
    %c0_12 = arith.constant 0 : index
    %c0_13 = arith.constant 0 : index
    %19 = vector.load %arg3[%c0_12, %c0_13] : memref<16x16xf32, #tpu.memory_space<vmem>>, vector<16x16xf32>
    %20 = vector.extract_strided_slice %17 {offsets = [0, 128], sizes = [16, 32], strides = [1, 1]} : vector<16x256xf32> to vector<16x32xf32>
    %21 = vector.extract_strided_slice %20 {offsets = [0, 0], sizes = [16, 16], strides = [1, 1]} : vector<16x32xf32> to vector<16x16xf32>
    %22 = vector.extract_strided_slice %20 {offsets = [0, 16], sizes = [16, 16], strides = [1, 1]} : vector<16x32xf32> to vector<16x16xf32>
    %23 = arith.mulf %21, %18 : vector<16x16xf32>
    %24 = arith.mulf %22, %19 : vector<16x16xf32>
    %25 = arith.subf %23, %24 : vector<16x16xf32>
    %26 = arith.mulf %22, %18 : vector<16x16xf32>
    %27 = arith.mulf %21, %19 : vector<16x16xf32>
    %28 = arith.addf %26, %27 : vector<16x16xf32>
    %29 = tpu.concatenate %25, %28 in 1 : vector<16x16xf32>, vector<16x16xf32> -> vector<16x32xf32>
    %30 = vector.extract_strided_slice %17 {offsets = [0, 160], sizes = [16, 32], strides = [1, 1]} : vector<16x256xf32> to vector<16x32xf32>
    %31 = vector.extract_strided_slice %30 {offsets = [0, 0], sizes = [16, 16], strides = [1, 1]} : vector<16x32xf32> to vector<16x16xf32>
    %32 = vector.extract_strided_slice %30 {offsets = [0, 16], sizes = [16, 16], strides = [1, 1]} : vector<16x32xf32> to vector<16x16xf32>
    %33 = arith.mulf %31, %18 : vector<16x16xf32>
    %34 = arith.mulf %32, %19 : vector<16x16xf32>
    %35 = arith.subf %33, %34 : vector<16x16xf32>
    %36 = arith.mulf %32, %18 : vector<16x16xf32>
    %37 = arith.mulf %31, %19 : vector<16x16xf32>
    %38 = arith.addf %36, %37 : vector<16x16xf32>
    %39 = tpu.concatenate %35, %38 in 1 : vector<16x16xf32>, vector<16x16xf32> -> vector<16x32xf32>
    %40 = vector.extract_strided_slice %17 {offsets = [0, 192], sizes = [16, 32], strides = [1, 1]} : vector<16x256xf32> to vector<16x32xf32>
    %41 = vector.extract_strided_slice %17 {offsets = [0, 224], sizes = [16, 32], strides = [1, 1]} : vector<16x256xf32> to vector<16x32xf32>
    %42 = tpu.iota {dimensions = array<i32: 0>} : vector<16x16xi32>
    %43 = tpu.iota {dimensions = array<i32: 1>} : vector<16x16xi32>
    %44 = arith.cmpi sge, %42, %43 : vector<16x16xi32>
    %45 = vector.extract_strided_slice %17 {offsets = [0, 0], sizes = [16, 32], strides = [1, 1]} : vector<16x256xf32> to vector<16x32xf32>
    %46 = vector.extract_strided_slice %45 {offsets = [0, 0], sizes = [16, 16], strides = [1, 1]} : vector<16x32xf32> to vector<16x16xf32>
    %47 = vector.extract_strided_slice %45 {offsets = [0, 16], sizes = [16, 16], strides = [1, 1]} : vector<16x32xf32> to vector<16x16xf32>
    %48 = arith.mulf %46, %18 : vector<16x16xf32>
    %49 = arith.mulf %47, %19 : vector<16x16xf32>
    %50 = arith.subf %48, %49 : vector<16x16xf32>
    %51 = arith.mulf %47, %18 : vector<16x16xf32>
    %52 = arith.mulf %46, %19 : vector<16x16xf32>
    %53 = arith.addf %51, %52 : vector<16x16xf32>
    %54 = tpu.concatenate %50, %53 in 1 : vector<16x16xf32>, vector<16x16xf32> -> vector<16x32xf32>
    %cst_14 = arith.constant 7.812500e-03 : f32
    %55 = vector.broadcast %cst_14 : f32 to vector<16x32xf32>
    %56 = arith.mulf %54, %55 : vector<16x32xf32>
    %cst_15 = arith.constant dense<0.000000e+00> : vector<16x16xf32>
    %57 = tpu.matmul %56, %29, %cst_15 {dimension_numbers = #tpu.dot_dimension_numbers<[1], [1], [0], [0], [0, 0, 1, 0], [], []>} : vector<16x32xf32>, vector<16x32xf32>, vector<16x16xf32> -> vector<16x16xf32>
    %cst_16 = arith.constant -1.000000e+30 : f32
    %58 = vector.broadcast %cst_16 : f32 to vector<16x16xf32>
    %59 = arith.select %44, %57, %58 : vector<16x16xi1>, vector<16x16xf32>
    %cst_17 = arith.constant dense<0xFF800000> : vector<16xf32>
    %60 = vector.multi_reduction <maximumf>, %59, %cst_17 [1] : vector<16x16xf32> to vector<16xf32>
    %61 = vector.shape_cast %60 : vector<16xf32> to vector<16x1xf32>
    %62 = vector.broadcast %61 : vector<16x1xf32> to vector<16x16xf32>
    %63 = arith.subf %59, %62 : vector<16x16xf32>
    %64 = math.exp %63 : vector<16x16xf32>
    %cst_18 = arith.constant dense<0.000000e+00> : vector<16xf32>
    %65 = vector.multi_reduction <add>, %64, %cst_18 [1] : vector<16x16xf32> to vector<16xf32>
    %66 = vector.shape_cast %65 : vector<16xf32> to vector<16x1xf32>
    %67 = vector.broadcast %66 : vector<16x1xf32> to vector<16x16xf32>
    %68 = arith.divf %64, %67 : vector<16x16xf32>
    %cst_19 = arith.constant dense<0.000000e+00> : vector<16x32xf32>
    %69 = tpu.matmul %68, %40, %cst_19 {dimension_numbers = #tpu.dot_dimension_numbers<[1], [0], [0], [1], [0, 0, 1, 1], [], []>} : vector<16x16xf32>, vector<16x32xf32>, vector<16x32xf32> -> vector<16x32xf32>
    %70 = vector.extract_strided_slice %17 {offsets = [0, 32], sizes = [16, 32], strides = [1, 1]} : vector<16x256xf32> to vector<16x32xf32>
    %71 = vector.extract_strided_slice %70 {offsets = [0, 0], sizes = [16, 16], strides = [1, 1]} : vector<16x32xf32> to vector<16x16xf32>
    %72 = vector.extract_strided_slice %70 {offsets = [0, 16], sizes = [16, 16], strides = [1, 1]} : vector<16x32xf32> to vector<16x16xf32>
    %73 = arith.mulf %71, %18 : vector<16x16xf32>
    %74 = arith.mulf %72, %19 : vector<16x16xf32>
    %75 = arith.subf %73, %74 : vector<16x16xf32>
    %76 = arith.mulf %72, %18 : vector<16x16xf32>
    %77 = arith.mulf %71, %19 : vector<16x16xf32>
    %78 = arith.addf %76, %77 : vector<16x16xf32>
    %79 = tpu.concatenate %75, %78 in 1 : vector<16x16xf32>, vector<16x16xf32> -> vector<16x32xf32>
    %cst_20 = arith.constant 7.812500e-03 : f32
    %80 = vector.broadcast %cst_20 : f32 to vector<16x32xf32>
    %81 = arith.mulf %79, %80 : vector<16x32xf32>
    %cst_21 = arith.constant dense<0.000000e+00> : vector<16x16xf32>
    %82 = tpu.matmul %81, %29, %cst_21 {dimension_numbers = #tpu.dot_dimension_numbers<[1], [1], [0], [0], [0, 0, 1, 0], [], []>} : vector<16x32xf32>, vector<16x32xf32>, vector<16x16xf32> -> vector<16x16xf32>
    %cst_22 = arith.constant -1.000000e+30 : f32
    %83 = vector.broadcast %cst_22 : f32 to vector<16x16xf32>
    %84 = arith.select %44, %82, %83 : vector<16x16xi1>, vector<16x16xf32>
    %cst_23 = arith.constant dense<0xFF800000> : vector<16xf32>
    %85 = vector.multi_reduction <maximumf>, %84, %cst_23 [1] : vector<16x16xf32> to vector<16xf32>
    %86 = vector.shape_cast %85 : vector<16xf32> to vector<16x1xf32>
    %87 = vector.broadcast %86 : vector<16x1xf32> to vector<16x16xf32>
    %88 = arith.subf %84, %87 : vector<16x16xf32>
    %89 = math.exp %88 : vector<16x16xf32>
    %cst_24 = arith.constant dense<0.000000e+00> : vector<16xf32>
    %90 = vector.multi_reduction <add>, %89, %cst_24 [1] : vector<16x16xf32> to vector<16xf32>
    %91 = vector.shape_cast %90 : vector<16xf32> to vector<16x1xf32>
    %92 = vector.broadcast %91 : vector<16x1xf32> to vector<16x16xf32>
    %93 = arith.divf %89, %92 : vector<16x16xf32>
    %cst_25 = arith.constant dense<0.000000e+00> : vector<16x32xf32>
    %94 = tpu.matmul %93, %40, %cst_25 {dimension_numbers = #tpu.dot_dimension_numbers<[1], [0], [0], [1], [0, 0, 1, 1], [], []>} : vector<16x16xf32>, vector<16x32xf32>, vector<16x32xf32> -> vector<16x32xf32>
    %95 = vector.extract_strided_slice %17 {offsets = [0, 64], sizes = [16, 32], strides = [1, 1]} : vector<16x256xf32> to vector<16x32xf32>
    %96 = vector.extract_strided_slice %95 {offsets = [0, 0], sizes = [16, 16], strides = [1, 1]} : vector<16x32xf32> to vector<16x16xf32>
    %97 = vector.extract_strided_slice %95 {offsets = [0, 16], sizes = [16, 16], strides = [1, 1]} : vector<16x32xf32> to vector<16x16xf32>
    %98 = arith.mulf %96, %18 : vector<16x16xf32>
    %99 = arith.mulf %97, %19 : vector<16x16xf32>
    %100 = arith.subf %98, %99 : vector<16x16xf32>
    %101 = arith.mulf %97, %18 : vector<16x16xf32>
    %102 = arith.mulf %96, %19 : vector<16x16xf32>
    %103 = arith.addf %101, %102 : vector<16x16xf32>
    %104 = tpu.concatenate %100, %103 in 1 : vector<16x16xf32>, vector<16x16xf32> -> vector<16x32xf32>
    %cst_26 = arith.constant 7.812500e-03 : f32
    %105 = vector.broadcast %cst_26 : f32 to vector<16x32xf32>
    %106 = arith.mulf %104, %105 : vector<16x32xf32>
    %cst_27 = arith.constant dense<0.000000e+00> : vector<16x16xf32>
    %107 = tpu.matmul %106, %39, %cst_27 {dimension_numbers = #tpu.dot_dimension_numbers<[1], [1], [0], [0], [0, 0, 1, 0], [], []>} : vector<16x32xf32>, vector<16x32xf32>, vector<16x16xf32> -> vector<16x16xf32>
    %cst_28 = arith.constant -1.000000e+30 : f32
    %108 = vector.broadcast %cst_28 : f32 to vector<16x16xf32>
    %109 = arith.select %44, %107, %108 : vector<16x16xi1>, vector<16x16xf32>
    %cst_29 = arith.constant dense<0xFF800000> : vector<16xf32>
    %110 = vector.multi_reduction <maximumf>, %109, %cst_29 [1] : vector<16x16xf32> to vector<16xf32>
    %111 = vector.shape_cast %110 : vector<16xf32> to vector<16x1xf32>
    %112 = vector.broadcast %111 : vector<16x1xf32> to vector<16x16xf32>
    %113 = arith.subf %109, %112 : vector<16x16xf32>
    %114 = math.exp %113 : vector<16x16xf32>
    %cst_30 = arith.constant dense<0.000000e+00> : vector<16xf32>
    %115 = vector.multi_reduction <add>, %114, %cst_30 [1] : vector<16x16xf32> to vector<16xf32>
    %116 = vector.shape_cast %115 : vector<16xf32> to vector<16x1xf32>
    %117 = vector.broadcast %116 : vector<16x1xf32> to vector<16x16xf32>
    %118 = arith.divf %114, %117 : vector<16x16xf32>
    %cst_31 = arith.constant dense<0.000000e+00> : vector<16x32xf32>
    %119 = tpu.matmul %118, %41, %cst_31 {dimension_numbers = #tpu.dot_dimension_numbers<[1], [0], [0], [1], [0, 0, 1, 1], [], []>} : vector<16x16xf32>, vector<16x32xf32>, vector<16x32xf32> -> vector<16x32xf32>
    %120 = vector.extract_strided_slice %17 {offsets = [0, 96], sizes = [16, 32], strides = [1, 1]} : vector<16x256xf32> to vector<16x32xf32>
    %121 = vector.extract_strided_slice %120 {offsets = [0, 0], sizes = [16, 16], strides = [1, 1]} : vector<16x32xf32> to vector<16x16xf32>
    %122 = vector.extract_strided_slice %120 {offsets = [0, 16], sizes = [16, 16], strides = [1, 1]} : vector<16x32xf32> to vector<16x16xf32>
    %123 = arith.mulf %121, %18 : vector<16x16xf32>
    %124 = arith.mulf %122, %19 : vector<16x16xf32>
    %125 = arith.subf %123, %124 : vector<16x16xf32>
    %126 = arith.mulf %122, %18 : vector<16x16xf32>
    %127 = arith.mulf %121, %19 : vector<16x16xf32>
    %128 = arith.addf %126, %127 : vector<16x16xf32>
    %129 = tpu.concatenate %125, %128 in 1 : vector<16x16xf32>, vector<16x16xf32> -> vector<16x32xf32>
    %cst_32 = arith.constant 7.812500e-03 : f32
    %130 = vector.broadcast %cst_32 : f32 to vector<16x32xf32>
    %131 = arith.mulf %129, %130 : vector<16x32xf32>
    %cst_33 = arith.constant dense<0.000000e+00> : vector<16x16xf32>
    %132 = tpu.matmul %131, %39, %cst_33 {dimension_numbers = #tpu.dot_dimension_numbers<[1], [1], [0], [0], [0, 0, 1, 0], [], []>} : vector<16x32xf32>, vector<16x32xf32>, vector<16x16xf32> -> vector<16x16xf32>
    %cst_34 = arith.constant -1.000000e+30 : f32
    %133 = vector.broadcast %cst_34 : f32 to vector<16x16xf32>
    %134 = arith.select %44, %132, %133 : vector<16x16xi1>, vector<16x16xf32>
    %cst_35 = arith.constant dense<0xFF800000> : vector<16xf32>
    %135 = vector.multi_reduction <maximumf>, %134, %cst_35 [1] : vector<16x16xf32> to vector<16xf32>
    %136 = vector.shape_cast %135 : vector<16xf32> to vector<16x1xf32>
    %137 = vector.broadcast %136 : vector<16x1xf32> to vector<16x16xf32>
    %138 = arith.subf %134, %137 : vector<16x16xf32>
    %139 = math.exp %138 : vector<16x16xf32>
    %cst_36 = arith.constant dense<0.000000e+00> : vector<16xf32>
    %140 = vector.multi_reduction <add>, %139, %cst_36 [1] : vector<16x16xf32> to vector<16xf32>
    %141 = vector.shape_cast %140 : vector<16xf32> to vector<16x1xf32>
    %142 = vector.broadcast %141 : vector<16x1xf32> to vector<16x16xf32>
    %143 = arith.divf %139, %142 : vector<16x16xf32>
    %cst_37 = arith.constant dense<0.000000e+00> : vector<16x32xf32>
    %144 = tpu.matmul %143, %41, %cst_37 {dimension_numbers = #tpu.dot_dimension_numbers<[1], [0], [0], [1], [0, 0, 1, 1], [], []>} : vector<16x16xf32>, vector<16x32xf32>, vector<16x32xf32> -> vector<16x32xf32>
    %145 = tpu.concatenate %69, %94, %119, %144 in 1 : vector<16x32xf32>, vector<16x32xf32>, vector<16x32xf32>, vector<16x32xf32> -> vector<16x128xf32>
    %c0_38 = arith.constant 0 : index
    %c0_39 = arith.constant 0 : index
    %146 = vector.load %arg7[%c0_38, %c0_39] : memref<128x128xf32, #tpu.memory_space<vmem>>, vector<128x128xf32>
    %cst_40 = arith.constant dense<0.000000e+00> : vector<16x128xf32>
    %147 = tpu.matmul %145, %146, %cst_40 {dimension_numbers = #tpu.dot_dimension_numbers<[1], [0], [0], [1], [0, 0, 1, 1], [], []>} : vector<16x128xf32>, vector<128x128xf32>, vector<16x128xf32> -> vector<16x128xf32>
    %cst_41 = arith.constant 2.200000e-01 : f32
    %148 = vector.broadcast %cst_41 : f32 to vector<16x128xf32>
    %149 = arith.mulf %147, %148 : vector<16x128xf32>
    %150 = arith.addf %149, %2 : vector<16x128xf32>
    %c0_42 = arith.constant 0 : index
    %c0_43 = arith.constant 0 : index
    %151 = vector.load %arg11[%c0_42, %c0_43] : memref<16x128xf32, #tpu.memory_space<vmem>>, vector<16x128xf32>
    tpu.vector_store %arg11[%c0_42, %c0_43], %150 {strides = array<i32>} : memref<16x128xf32, #tpu.memory_space<vmem>>, vector<16x128xf32>,
    %152 = arith.mulf %150, %150 : vector<16x128xf32>
    %cst_44 = arith.constant dense<0.000000e+00> : vector<16xf32>
    %153 = vector.multi_reduction <add>, %152, %cst_44 [1] : vector<16x128xf32> to vector<16xf32>
    %154 = vector.shape_cast %153 : vector<16xf32> to vector<16x1xf32>
    %cst_45 = arith.constant 1.280000e+02 : f32
    %155 = vector.broadcast %cst_45 : f32 to vector<16x1xf32>
    %156 = arith.divf %154, %155 : vector<16x1xf32>
    %cst_46 = arith.constant 9.99999997E-7 : f32
    %157 = vector.broadcast %cst_46 : f32 to vector<16x1xf32>
    %158 = arith.addf %156, %157 : vector<16x1xf32>
    %159 = math.rsqrt %158 : vector<16x1xf32>
    %160 = vector.broadcast %159 : vector<16x1xf32> to vector<16x128xf32>
    %161 = arith.mulf %150, %160 : vector<16x128xf32>
    %c0_47 = arith.constant 0 : index
    %c0_48 = arith.constant 0 : index
    %162 = vector.load %arg5[%c0_47, %c0_48] : memref<1x128xf32, #tpu.memory_space<vmem>>, vector<1x128xf32>
    %163 = vector.broadcast %162 : vector<1x128xf32> to vector<16x128xf32>
    %164 = arith.mulf %161, %163 : vector<16x128xf32>
    %c0_49 = arith.constant 0 : index
    %c0_50 = arith.constant 0 : index
    %165 = vector.load %arg8[%c0_49, %c0_50] : memref<128x512xf32, #tpu.memory_space<vmem>>, vector<128x512xf32>
    %cst_51 = arith.constant dense<0.000000e+00> : vector<16x512xf32>
    %166 = tpu.matmul %164, %165, %cst_51 {dimension_numbers = #tpu.dot_dimension_numbers<[1], [0], [0], [1], [0, 0, 1, 1], [], []>} : vector<16x128xf32>, vector<128x512xf32>, vector<16x512xf32> -> vector<16x512xf32>
    %167 = vector.extract_strided_slice %166 {offsets = [0, 0], sizes = [16, 256], strides = [1, 1]} : vector<16x512xf32> to vector<16x256xf32>
    %168 = vector.extract_strided_slice %166 {offsets = [0, 256], sizes = [16, 256], strides = [1, 1]} : vector<16x512xf32> to vector<16x256xf32>
    %169 = arith.negf %167 : vector<16x256xf32>
    %170 = math.exp %169 : vector<16x256xf32>
    %cst_52 = arith.constant 1.000000e+00 : f32
    %171 = vector.broadcast %cst_52 : f32 to vector<16x256xf32>
    %172 = arith.addf %171, %170 : vector<16x256xf32>
    %173 = arith.divf %171, %172 : vector<16x256xf32>
    %174 = arith.mulf %167, %173 : vector<16x256xf32>
    %175 = arith.mulf %174, %168 : vector<16x256xf32>
    %c0_53 = arith.constant 0 : index
    %c0_54 = arith.constant 0 : index
    %176 = vector.load %arg9[%c0_53, %c0_54] : memref<256x128xf32, #tpu.memory_space<vmem>>, vector<256x128xf32>
    %cst_55 = arith.constant dense<0.000000e+00> : vector<16x128xf32>
    %177 = tpu.matmul %175, %176, %cst_55 {dimension_numbers = #tpu.dot_dimension_numbers<[1], [0], [0], [1], [0, 0, 1, 1], [], []>} : vector<16x256xf32>, vector<256x128xf32>, vector<16x128xf32> -> vector<16x128xf32>
    %cst_56 = arith.constant 2.200000e-01 : f32
    %178 = vector.broadcast %cst_56 : f32 to vector<16x128xf32>
    %179 = arith.mulf %177, %178 : vector<16x128xf32>
    %c0_57 = arith.constant 0 : index
    %c0_58 = arith.constant 0 : index
    %180 = vector.load %arg10[%c0_57, %c0_58] : memref<16x128xf32, #tpu.memory_space<vmem>>, vector<16x128xf32>
    tpu.vector_store %arg10[%c0_57, %c0_58], %179 {strides = array<i32>} : memref<16x128xf32, #tpu.memory_space<vmem>>, vector<16x128xf32>,
    return
  }
}

</mosaic_0001>

<llo_original>
// kernel: tpu_custom_call.1
$region0: #{tpu_custom_call.1}
  #allocation0 [shape = 'u32[]', space=smem, size = 0x4, offset = 0x4, fixed_abs, tag = 'smem constant byte address 0x4 - core index']
  #allocation1 [shape = 'u32[144,128]{1,0:T(1,128)}', space=vmem, size = 0x12000, scoped, tag = 'internal scratch']
  %s0 = inlined_call_operand.hbm [shape: f32[16,128], index: 0, kind: input, shape index: {}]
  %s1 = inlined_call_operand.hbm [shape: f32[16,128], index: 1, kind: input, shape index: {}]
  %s2 = inlined_call_operand.hbm [shape: f32[16,16], index: 2, kind: input, shape index: {}]
  %s3 = inlined_call_operand.hbm [shape: f32[16,16], index: 3, kind: input, shape index: {}]
  %s4 = inlined_call_operand.vmem [shape: f32[1,128], index: 4, kind: input, shape index: {}]
  %s5 = inlined_call_operand.vmem [shape: f32[1,128], index: 5, kind: input, shape index: {}]
  %s6 = inlined_call_operand.hbm [shape: f32[128,256], index: 6, kind: input, shape index: {}]
  %s7 = inlined_call_operand.hbm [shape: f32[128,128], index: 7, kind: input, shape index: {}]
  %s8 = inlined_call_operand.hbm [shape: f32[128,512], index: 8, kind: input, shape index: {}]
  %s9 = inlined_call_operand.hbm [shape: f32[256,128], index: 9, kind: input, shape index: {}]
  %s10 = inlined_call_operand.hbm [shape: f32[16,128], index: 10, kind: output, shape index: {0}]
  %s11 = inlined_call_operand.hbm [shape: f32[16,128], index: 11, kind: output, shape index: {1}]
  %12 = xla_tuple %s10, %s11
  %s13 = sld [smem:[#allocation0]]
  $region90: #{tpu_custom_call.1} parent=0
    _
  %s15 = ssub.s32 1, %s13
  %s16 = scalar_select 0, %s15, %s13
  $region1: #{tpu_custom_call.1} parent=0
    #allocation2 [shape = 'u8[8192]{0}', space=vmem, size = 0x2000, scoped, tag = 'input window, operand 0, single buffered']
    #allocation3 [shape = 's32[1]{0}', space=sflag, size = 0x4, scoped, tag = 'scoped memory for tpu_custom_call.1']
    #allocation4 [shape = 's32[1]{0}', space=sflag, size = 0x4, scoped, tag = 'scoped memory for tpu_custom_call.1']
    #allocation5 [shape = 'u8[8192]{0}', space=vmem, size = 0x2000, scoped, tag = 'input window, operand 1, single buffered']
    #allocation6 [shape = 's32[1]{0}', space=sflag, size = 0x4, scoped, tag = 'scoped memory for tpu_custom_call.1']
    #allocation7 [shape = 'u8[8192]{0}', space=vmem, size = 0x2000, scoped, tag = 'input window, operand 2, single buffered']
    #allocation8 [shape = 'u8[8192]{0}', space=vmem, size = 0x2000, scoped, tag = 'input window, operand 3, single buffered']
    #allocation9 [shape = 's32[1]{0}', space=sflag, size = 0x4, scoped, tag = 'scoped memory for tpu_custom_call.1']
    #allocation10 [shape = 'u8[131072]{0}', space=vmem, size = 0x20000, scoped, tag = 'input window, operand 6, single buffered']
    #allocation11 [shape = 'u8[65536]{0}', space=vmem, size = 0x10000, scoped, tag = 'input window, operand 7, single buffered']
    #allocation12 [shape = 's32[1]{0}', space=sflag, size = 0x4, scoped, tag = 'scoped memory for tpu_custom_call.1']
    #allocation13 [shape = 'u8[262144]{0}', space=vmem, size = 0x40000, scoped, tag = 'input window, operand 8, single buffered']
    #allocation14 [shape = 'u8[131072]{0}', space=vmem, size = 0x20000, scoped, tag = 'input window, operand 9, single buffered']
    #allocation15 [shape = 's32[1]{0}', space=sflag, size = 0x4, scoped, tag = 'scoped memory for tpu_custom_call.1']
    #allocation16 [shape = 'u8[8192]{0}', space=vmem, size = 0x2000, scoped, tag = 'output window, operand 0, single buffered']
    #allocation17 [shape = 'u8[8192]{0}', space=vmem, size = 0x2000, scoped, tag = 'output window, operand 1, single buffered']
    #allocation18 [shape = 's32[1]{0}', space=sflag, size = 0x4, scoped, tag = 'scoped memory for tpu_custom_call.1']
    %17 = vsyncpa [#allocation3], 0
    %18 = vsyncpa [#allocation6], 0
    %19 = vsyncpa [#allocation9], 0
    %20 = vsyncpa [#allocation12], 0
    %21 = vsyncpa [#allocation15], 0
    %22 = vsyncpa [#allocation4], 0
    %23 = vsyncpa [#allocation18], 0
    // Predicated region
    $region2: #{tpu_custom_call.1} parent=1 // pred_check
      _
    $region3: #{tpu_custom_call.1} parent=1 // pred_check_branch
      %25 = sbr.rel (0) target = $region5
    $region4: #{tpu_custom_call.1} parent=1 // pred_region
      %s27 = ssub.s32 256, 256
      %28 = vsyncadd [#allocation3], %s27
      %s29 = sshll.u32 [#allocation2], 4
      %s30 = int_to_ptr.vmem [resolvable:$true] %s29
      %35 = dma.hbm_to_vmem [thread:$0]  %s0, 256, %s30, [#allocation3], 128, 128, 8
    $region5: #{tpu_custom_call.1} parent=1 // pred_fallthru
      _
    // Predicated region
    $region6: #{tpu_custom_call.1} parent=1 // pred_check
      _
    $region7: #{tpu_custom_call.1} parent=1 // pred_check_branch
      %37 = sbr.rel (0) target = $region9
    $region8: #{tpu_custom_call.1} parent=1 // pred_region
      %s39 = ssub.s32 256, 256
      %40 = vsyncadd [#allocation6], %s39
      %s41 = sshll.u32 [#allocation5], 4
      %s42 = int_to_ptr.vmem [resolvable:$true] %s41
      %47 = dma.hbm_to_vmem [thread:$0]  %s1, 256, %s42, [#allocation6], 128, 128, 8
    $region9: #{tpu_custom_call.1} parent=1 // pred_fallthru
      _
    // Predicated region
    $region10: #{tpu_custom_call.1} parent=1 // pred_check
      _
    $region11: #{tpu_custom_call.1} parent=1 // pred_check_branch
      %49 = sbr.rel (0) target = $region13
    $region12: #{tpu_custom_call.1} parent=1 // pred_region
      %s51 = ssub.s32 256, 256
      %52 = vsyncadd [#allocation6], %s51
      %s53 = sshll.u32 [#allocation7], 4
      %s54 = int_to_ptr.vmem [resolvable:$true] %s53
      %59 = dma.hbm_to_vmem [thread:$0]  %s2, 256, %s54, [#allocation6], 128, 128, 8
    $region13: #{tpu_custom_call.1} parent=1 // pred_fallthru
      _
    // Predicated region
    $region14: #{tpu_custom_call.1} parent=1 // pred_check
      _
    $region15: #{tpu_custom_call.1} parent=1 // pred_check_branch
      %61 = sbr.rel (0) target = $region17
    $region16: #{tpu_custom_call.1} parent=1 // pred_region
      %s63 = ssub.s32 256, 256
      %64 = vsyncadd [#allocation9], %s63
      %s65 = sshll.u32 [#allocation8], 4
      %s66 = int_to_ptr.vmem [resolvable:$true] %s65
      %71 = dma.hbm_to_vmem [thread:$0]  %s3, 256, %s66, [#allocation9], 128, 128, 8
    $region17: #{tpu_custom_call.1} parent=1 // pred_fallthru
      _
    // Predicated region
    $region18: #{tpu_custom_call.1} parent=1 // pred_check
      _
    $region19: #{tpu_custom_call.1} parent=1 // pred_check_branch
      %73 = sbr.rel (0) target = $region21
    $region20: #{tpu_custom_call.1} parent=1 // pred_region
      _
    $region21: #{tpu_custom_call.1} parent=1 // pred_fallthru
      _
    // Predicated region
    $region22: #{tpu_custom_call.1} parent=1 // pred_check
      _
    $region23: #{tpu_custom_call.1} parent=1 // pred_check_branch
      %75 = sbr.rel (0) target = $region25
    $region24: #{tpu_custom_call.1} parent=1 // pred_region
      _
    $region25: #{tpu_custom_call.1} parent=1 // pred_fallthru
      _
    // Predicated region
    $region26: #{tpu_custom_call.1} parent=1 // pred_check
      _
    $region27: #{tpu_custom_call.1} parent=1 // pred_check_branch
      %77 = sbr.rel (0) target = $region29
    $region28: #{tpu_custom_call.1} parent=1 // pred_region
      %s79 = ssub.s32 4096, 4096
      %80 = vsyncadd [#allocation9], %s79
      %s81 = sshll.u32 [#allocation10], 4
      %s82 = int_to_ptr.vmem [resolvable:$true] %s81
      %87 = dma.hbm_to_vmem [thread:$0]  %s6, 4096, %s82, [#allocation9], 256, 256, 16
    $region29: #{tpu_custom_call.1} parent=1 // pred_fallthru
      _
    // Predicated region
    $region30: #{tpu_custom_call.1} parent=1 // pred_check
      _
    $region31: #{tpu_custom_call.1} parent=1 // pred_check_branch
      %89 = sbr.rel (0) target = $region33
    $region32: #{tpu_custom_call.1} parent=1 // pred_region
      %s91 = ssub.s32 2048, 2048
      %92 = vsyncadd [#allocation12], %s91
      %s93 = sshll.u32 [#allocation11], 4
      %s94 = int_to_ptr.vmem [resolvable:$true] %s93
      %99 = dma.hbm_to_vmem [thread:$0]  %s7, 2048, %s94, [#allocation12], 128, 128, 8
    $region33: #{tpu_custom_call.1} parent=1 // pred_fallthru
      _
    // Predicated region
    $region34: #{tpu_custom_call.1} parent=1 // pred_check
      _
    $region35: #{tpu_custom_call.1} parent=1 // pred_check_branch
      %101 = sbr.rel (0) target = $region37
    $region36: #{tpu_custom_call.1} parent=1 // pred_region
      %s103 = ssub.s32 8192, 8192
      %104 = vsyncadd [#allocation12], %s103
      %s105 = sshll.u32 [#allocation13], 4
      %s106 = int_to_ptr.vmem [resolvable:$true] %s105
      %111 = dma.hbm_to_vmem [thread:$0]  %s8, 8192, %s106, [#allocation12], 512, 512, 32
    $region37: #{tpu_custom_call.1} parent=1 // pred_fallthru
      _
    // Predicated region
    $region38: #{tpu_custom_call.1} parent=1 // pred_check
      _
    $region39: #{tpu_custom_call.1} parent=1 // pred_check_branch
      %113 = sbr.rel (0) target = $region41
    $region40: #{tpu_custom_call.1} parent=1 // pred_region
      %s115 = ssub.s32 4096, 4096
      %116 = vsyncadd [#allocation15], %s115
      %s117 = sshll.u32 [#allocation14], 4
      %s118 = int_to_ptr.vmem [resolvable:$true] %s117
      %123 = dma.hbm_to_vmem [thread:$0]  %s9, 4096, %s118, [#allocation15], 128, 128, 8
    $region41: #{tpu_custom_call.1} parent=1 // pred_fallthru
      _
    // Predicated region
    $region42: #{tpu_custom_call.1} parent=1 // pred_check
      _
    $region43: #{tpu_custom_call.1} parent=1 // pred_check_branch
      %125 = sbr.rel (0) target = $region45
    $region44: #{tpu_custom_call.1} parent=1 // pred_region
      %126 = dma.done [#allocation3], 256
    $region45: #{tpu_custom_call.1} parent=1 // pred_fallthru
      _
    // Predicated region
    $region46: #{tpu_custom_call.1} parent=1 // pred_check
      _
    $region47: #{tpu_custom_call.1} parent=1 // pred_check_branch
      %128 = sbr.rel (0) target = $region49
    $region48: #{tpu_custom_call.1} parent=1 // pred_region
      %129 = dma.done [#allocation6], 256
    $region49: #{tpu_custom_call.1} parent=1 // pred_fallthru
      _
    // Predicated region
    $region50: #{tpu_custom_call.1} parent=1 // pred_check
      _
    $region51: #{tpu_custom_call.1} parent=1 // pred_check_branch
      %131 = sbr.rel (0) target = $region53
    $region52: #{tpu_custom_call.1} parent=1 // pred_region
      %132 = dma.done [#allocation6], 256
    $region53: #{tpu_custom_call.1} parent=1 // pred_fallthru
      _
    // Predicated region
    $region54: #{tpu_custom_call.1} parent=1 // pred_check
      _
    $region55: #{tpu_custom_call.1} parent=1 // pred_check_branch
      %134 = sbr.rel (0) target = $region57
    $region56: #{tpu_custom_call.1} parent=1 // pred_region
      %135 = dma.done [#allocation9], 256
    $region57: #{tpu_custom_call.1} parent=1 // pred_fallthru
      _
    // Predicated region
    $region58: #{tpu_custom_call.1} parent=1 // pred_check
      _
    $region59: #{tpu_custom_call.1} parent=1 // pred_check_branch
      %137 = sbr.rel (0) target = $region61
    $region60: #{tpu_custom_call.1} parent=1 // pred_region
      %138 = dma.done [#allocation9], 4096
    $region61: #{tpu_custom_call.1} parent=1 // pred_fallthru
      _
    // Predicated region
    $region62: #{tpu_custom_call.1} parent=1 // pred_check
      _
    $region63: #{tpu_custom_call.1} parent=1 // pred_check_branch
      %140 = sbr.rel (0) target = $region65
    $region64: #{tpu_custom_call.1} parent=1 // pred_region
      %141 = dma.done [#allocation12], 2048
    $region65: #{tpu_custom_call.1} parent=1 // pred_fallthru
      _
    // Predicated region
    $region66: #{tpu_custom_call.1} parent=1 // pred_check
      _
    $region67: #{tpu_custom_call.1} parent=1 // pred_check_branch
      %143 = sbr.rel (0) target = $region69
    $region68: #{tpu_custom_call.1} parent=1 // pred_region
      %144 = dma.done [#allocation12], 8192
    $region69: #{tpu_custom_call.1} parent=1 // pred_fallthru
      _
    // Predicated region
    $region70: #{tpu_custom_call.1} parent=1 // pred_check
      _
    $region71: #{tpu_custom_call.1} parent=1 // pred_check_branch
      %146 = sbr.rel (0) target = $region73
    $region72: #{tpu_custom_call.1} parent=1 // pred_region
      %147 = dma.done [#allocation15], 4096
    $region73: #{tpu_custom_call.1} parent=1 // pred_fallthru
      _
    %v148 = vld [vmem:[#allocation2] sm:$0xff]
    %v149 = vld [vmem:[#allocation2 + $0x8] sm:$0xff]
    %v150 = vld [vmem:[#allocation5] sm:$0xff]
    %v151 = vld [vmem:[#allocation5 + $0x8] sm:$0xff]
    %v152 = vadd.f32 %v148, %v150
    %v153 = vadd.f32 %v149, %v151
    %v154 = vmul.f32 %v152, %v152
    %v155 = vmul.f32 %v153, %v153
    %156 = vadd.xlane.f32.xlu0 %v154
    %v157 = vpop.xlane.xlu0 %156
    %158 = vadd.xlane.f32.xlu0 %v155
    %v159 = vpop.xlane.xlu0 %158
    %v160 = vrcp.pop 128.0
    %v161 = vmul.f32 %v157, %v160
    %v162 = vmul.f32 %v159, %v160
    %v163 = vadd.f32 %v161, 1e-06
    %v164 = vadd.f32 %v162, 1e-06
    %v165 = vrsqrt.pop %v163
    %v166 = vrsqrt.pop %v164
    %v167 = vmul.f32 %v152, %v165
    %v168 = vmul.f32 %v153, %v166
    %v169 = vld [vmem:[%s4] sm:$0x1]
    %v171 = vlaneseq
    %v172 = vshrl.u32 %v171, 7
    %v173 = vsub.s32 0, %v172
    %v174 = vrot.slane %v169, %v173
    %v176 = vmul.f32 %v167, %v174
    %v177 = vmul.f32 %v168, %v174
    %v178 = vld [vmem:[#allocation10] sm:$0xff]
    %v179 = vld [vmem:[#allocation10 + $0x8] sm:$0xff]
    %v180 = vld [vmem:[#allocation10 + $0x10] sm:$0xff]
    %v181 = vld [vmem:[#allocation10 + $0x18] sm:$0xff]
    %v182 = vld [vmem:[#allocation10 + $0x20] sm:$0xff]
    %v183 = vld [vmem:[#allocation10 + $0x28] sm:$0xff]
    %v184 = vld [vmem:[#allocation10 + $0x30] sm:$0xff]
    %v185 = vld [vmem:[#allocation10 + $0x38] sm:$0xff]
    %v186 = vld [vmem:[#allocation10 + $0x40] sm:$0xff]
    %v187 = vld [vmem:[#allocation10 + $0x48] sm:$0xff]
    %v188 = vld [vmem:[#allocation10 + $0x50] sm:$0xff]
    %v189 = vld [vmem:[#allocation10 + $0x58] sm:$0xff]
    %v190 = vld [vmem:[#allocation10 + $0x60] sm:$0xff]
    %v191 = vld [vmem:[#allocation10 + $0x68] sm:$0xff]
    %v192 = vld [vmem:[#allocation10 + $0x70] sm:$0xff]
    %v193 = vld [vmem:[#allocation10 + $0x78] sm:$0xff]
    %v194 = vld [vmem:[#allocation10 + $0x80] sm:$0xff]
    %v195 = vld [vmem:[#allocation10 + $0x88] sm:$0xff]
    %v196 = vld [vmem:[#allocation10 + $0x90] sm:$0xff]
    %v197 = vld [vmem:[#allocation10 + $0x98] sm:$0xff]
    %v198 = vld [vmem:[#allocation10 + $0xa0] sm:$0xff]
    %v199 = vld [vmem:[#allocation10 + $0xa8] sm:$0xff]
    %v200 = vld [vmem:[#allocation10 + $0xb0] sm:$0xff]
    %v201 = vld [vmem:[#allocation10 + $0xb8] sm:$0xff]
    %v202 = vld [vmem:[#allocation10 + $0xc0] sm:$0xff]
    %v203 = vld [vmem:[#allocation10 + $0xc8] sm:$0xff]
    %v204 = vld [vmem:[#allocation10 + $0xd0] sm:$0xff]
    %v205 = vld [vmem:[#allocation10 + $0xd8] sm:$0xff]
    %v206 = vld [vmem:[#allocation10 + $0xe0] sm:$0xff]
    %v207 = vld [vmem:[#allocation10 + $0xe8] sm:$0xff]
    %v208 = vld [vmem:[#allocation10 + $0xf0] sm:$0xff]
    %v209 = vld [vmem:[#allocation10 + $0xf8] sm:$0xff]
    %210 = vmatprep.subr.mxu0 %v179
    %211 = vmatpush1.msra.mxu0 %v178
    %212 = vmatprep.subr.mxu0 %v181
    %213 = vmatpush1.msra.mxu0 %v180
    %214 = vmatprep.subr.mxu0 %v183
    %215 = vmatpush1.msra.mxu0 %v182
    %216 = vmatprep.subr.mxu0 %v185
    %217 = vmatpush1.msra.mxu0 %v184
    %218 = vmatprep.subr.mxu0 %v187
    %219 = vmatpush1.msra.mxu0 %v186
    %220 = vmatprep.subr.mxu0 %v189
    %221 = vmatpush1.msra.mxu0 %v188
    %222 = vmatprep.subr.mxu0 %v191
    %223 = vmatpush1.msra.mxu0 %v190
    %224 = vmatprep.subr.mxu0 %v193
    %225 = vmatpush1.msra.mxu0 %v192
    %226 = vmatprep.subr.mxu0 %v195
    %227 = vmatpush1.msra.mxu0 %v194
    %228 = vmatprep.subr.mxu0 %v197
    %229 = vmatpush1.msra.mxu0 %v196
    %230 = vmatprep.subr.mxu0 %v199
    %231 = vmatpush1.msra.mxu0 %v198
    %232 = vmatprep.subr.mxu0 %v201
    %233 = vmatpush1.msra.mxu0 %v200
    %234 = vmatprep.subr.mxu0 %v203
    %235 = vmatpush1.msra.mxu0 %v202
    %236 = vmatprep.subr.mxu0 %v205
    %237 = vmatpush1.msra.mxu0 %v204
    %238 = vmatprep.subr.mxu0 %v207
    %239 = vmatpush1.msra.mxu0 %v206
    %240 = vmatprep.subr.mxu0 %v209
    %241 = vmatpush1.msra.mxu0 %v208
    %242 = vmatprep.subr.mxu0 0.0
    %243 = vmatpush1.msra.mxu0 0.0
    %244 = vmatprep.subr.mxu0 0.0
    %245 = vmatpush1.msra.mxu0 0.0
    %246 = vmatprep.subr.mxu0 0.0
    %247 = vmatpush1.msra.mxu0 0.0
    %248 = vmatprep.subr.mxu0 0.0
    %249 = vmatpush1.msra.mxu0 0.0
    %250 = vmatprep.subr.mxu0 0.0
    %251 = vmatpush1.msra.mxu0 0.0
    %252 = vmatprep.subr.mxu0 0.0
    %253 = vmatpush1.msra.mxu0 0.0
    %254 = vmatprep.subr.mxu0 0.0
    %255 = vmatpush1.msra.mxu0 0.0
    %256 = vmatprep.subr.mxu0 0.0
    %257 = vmatpush1.msra.mxu0 0.0
    %258 = vmatprep.subr.mxu0 0.0
    %259 = vmatpush1.msra.mxu0 0.0
    %260 = vmatprep.subr.mxu0 0.0
    %261 = vmatpush1.msra.mxu0 0.0
    %262 = vmatprep.subr.mxu0 0.0
    %263 = vmatpush1.msra.mxu0 0.0
    %264 = vmatprep.subr.mxu0 0.0
    %265 = vmatpush1.msra.mxu0 0.0
    %266 = vmatprep.subr.mxu0 0.0
    %267 = vmatpush1.msra.mxu0 0.0
    %268 = vmatprep.subr.mxu0 0.0
    %269 = vmatpush1.msra.mxu0 0.0
    %270 = vmatprep.subr.mxu0 0.0
    %271 = vmatpush1.msra.mxu0 0.0
    %272 = vmatprep.subr.mxu0 0.0
    %273 = vmatpush1.msra.mxu0 0.0
    %274 = vmatprep.mubr.f32.mxu0 0.0
    %275 = vmatmul.mubr.f32.gmra.mrb[0].mxu0 %v176
    %v276 = vpop.f32.mrb[0].mxu0
    %v277 = vadd.f32 0.0, %v276
    %v278 = vpop.f32.mrb[0].mxu0
    %v279 = vadd.f32 0.0, %v278
    %280 = vmatprep.mubr.f32.mxu0 0.0
    %281 = vmatmul.mubr.f32.gmra.mrb[0].mxu0 %v177
    %v282 = vpop.f32.mrb[0].mxu0
    %v283 = vadd.f32 0.0, %v282
    %v284 = vpop.f32.mrb[0].mxu0
    %v285 = vadd.f32 0.0, %v284
    %286 = vdwg.mxu0
    %v287 = vld [vmem:[#allocation7] sm:$0xff]
    %v288 = vld [vmem:[#allocation7 + $0x8] sm:$0xff]
    %v289 = vld [vmem:[#allocation8] sm:$0xff]
    %v290 = vld [vmem:[#allocation8 + $0x8] sm:$0xff]
    %v291 = vmul.f32 %v279, %v287
    %v292 = vmul.f32 %v285, %v288
    %295 = vrot.lane.b32.xlu0 %v289, 16
    %v296 = vpop.permute.xlu0 %295
    %297 = vrot.lane.b32.xlu0 %v290, 16
    %v298 = vpop.permute.xlu0 %297
    %v301 = vmul.f32 %v279, %v296
    %v302 = vmul.f32 %v285, %v298
    %305 = vrot.lane.b32.xlu0 %v301, 112
    %v306 = vpop.permute.xlu0 %305
    %307 = vrot.lane.b32.xlu0 %v302, 112
    %v308 = vpop.permute.xlu0 %307
    %v311 = vsub.f32 %v291, %v306
    %v312 = vsub.f32 %v292, %v308
    %315 = vrot.lane.b32.xlu0 %v287, 16
    %v316 = vpop.permute.xlu0 %315
    %317 = vrot.lane.b32.xlu0 %v288, 16
    %v318 = vpop.permute.xlu0 %317
    %v321 = vmul.f32 %v279, %v316
    %v322 = vmul.f32 %v285, %v318
    %v323 = vmul.f32 %v279, %v289
    %v324 = vmul.f32 %v285, %v290
    %327 = vrot.lane.b32.xlu0 %v323, 16
    %v328 = vpop.permute.xlu0 %327
    %329 = vrot.lane.b32.xlu0 %v324, 16
    %v330 = vpop.permute.xlu0 %329
    %v333 = vadd.f32 %v321, %v328
    %v334 = vadd.f32 %v322, %v330
    %vm335 = vcmask 130048
    %v336 = vsel %vm335, %v311, %v333
    %v337 = vsel %vm335, %v312, %v334
    %338 = vrot.lane.b32.xlu0 %v287, 32
    %v339 = vpop.permute.xlu0 %338
    %340 = vrot.lane.b32.xlu0 %v288, 32
    %v341 = vpop.permute.xlu0 %340
    %v344 = vmul.f32 %v279, %v339
    %v345 = vmul.f32 %v285, %v341
    %346 = vrot.lane.b32.xlu0 %v289, 48
    %v347 = vpop.permute.xlu0 %346
    %348 = vrot.lane.b32.xlu0 %v290, 48
    %v349 = vpop.permute.xlu0 %348
    %v352 = vmul.f32 %v279, %v347
    %v353 = vmul.f32 %v285, %v349
    %356 = vrot.lane.b32.xlu0 %v352, 112
    %v357 = vpop.permute.xlu0 %356
    %358 = vrot.lane.b32.xlu0 %v353, 112
    %v359 = vpop.permute.xlu0 %358
    %v362 = vsub.f32 %v344, %v357
    %v363 = vsub.f32 %v345, %v359
    %364 = vrot.lane.b32.xlu0 %v287, 48
    %v365 = vpop.permute.xlu0 %364
    %366 = vrot.lane.b32.xlu0 %v288, 48
    %v367 = vpop.permute.xlu0 %366
    %v370 = vmul.f32 %v279, %v365
    %v371 = vmul.f32 %v285, %v367
    %372 = vrot.lane.b32.xlu0 %v289, 32
    %v373 = vpop.permute.xlu0 %372
    %374 = vrot.lane.b32.xlu0 %v290, 32
    %v375 = vpop.permute.xlu0 %374
    %v378 = vmul.f32 %v279, %v373
    %v379 = vmul.f32 %v285, %v375
    %382 = vrot.lane.b32.xlu0 %v378, 16
    %v383 = vpop.permute.xlu0 %382
    %384 = vrot.lane.b32.xlu0 %v379, 16
    %v385 = vpop.permute.xlu0 %384
    %v388 = vadd.f32 %v370, %v383
    %v389 = vadd.f32 %v371, %v385
    %392 = vrot.lane.b32.xlu0 %v362, 96
    %v393 = vpop.permute.xlu0 %392
    %394 = vrot.lane.b32.xlu0 %v363, 96
    %v395 = vpop.permute.xlu0 %394
    %400 = vrot.lane.b32.xlu0 %v388, 96
    %v401 = vpop.permute.xlu0 %400
    %402 = vrot.lane.b32.xlu0 %v389, 96
    %v403 = vpop.permute.xlu0 %402
    %v406 = vsel %vm335, %v393, %v401
    %v407 = vsel %vm335, %v395, %v403
    %v408 = vlaneseq
    %v409 = vshrl.u32 %v408, 7
    %v410 = vadd.s32 %v409, 8
    %v411 = vlaneseq
    %v412 = vand.u32 %v411, 127
    %vm413 = vcmp.ge.s32.totalorder %v409, %v412
    %vm414 = vcmp.ge.s32.totalorder %v410, %v412
    %v415 = vmul.f32 %v277, %v287
    %v416 = vmul.f32 %v283, %v288
    %v417 = vmul.f32 %v277, %v296
    %v418 = vmul.f32 %v283, %v298
    %421 = vrot.lane.b32.xlu0 %v417, 112
    %v422 = vpop.permute.xlu0 %421
    %423 = vrot.lane.b32.xlu0 %v418, 112
    %v424 = vpop.permute.xlu0 %423
    %v427 = vsub.f32 %v415, %v422
    %v428 = vsub.f32 %v416, %v424
    %v429 = vmul.f32 %v277, %v316
    %v430 = vmul.f32 %v283, %v318
    %v431 = vmul.f32 %v277, %v289
    %v432 = vmul.f32 %v283, %v290
    %435 = vrot.lane.b32.xlu0 %v431, 16
    %v436 = vpop.permute.xlu0 %435
    %437 = vrot.lane.b32.xlu0 %v432, 16
    %v438 = vpop.permute.xlu0 %437
    %v441 = vadd.f32 %v429, %v436
    %v442 = vadd.f32 %v430, %v438
    %v443 = vsel %vm335, %v427, %v441
    %v444 = vsel %vm335, %v428, %v442
    %v445 = vmul.f32 %v443, 0.0078125
    %v446 = vmul.f32 %v444, 0.0078125
    %vm447 = vcmask 261120
    %v449 = vsel %vm447, %v445, 0
    %v452 = vsel %vm447, %v446, 0
    %v455 = vsel %vm447, %v336, 0
    %v458 = vsel %vm447, %v337, 0
    %460 = vmatprep.subr.mxu0 0.0
    %461 = vmatpush1.xpose.msra.mxu0 %v455
    %462 = vmatprep.subr.mxu0 0.0
    %463 = vmatpush1.xpose.msra.mxu0 %v458
    %464 = vmatprep.subr.mxu0 0.0
    %465 = vmatpush1.xpose.msra.mxu0 0.0
    %466 = vmatprep.subr.mxu0 0.0
    %467 = vmatpush1.xpose.msra.mxu0 0.0
    %468 = vmatprep.subr.mxu0 0.0
    %469 = vmatpush1.xpose.msra.mxu0 0.0
    %470 = vmatprep.subr.mxu0 0.0
    %471 = vmatpush1.xpose.msra.mxu0 0.0
    %472 = vmatprep.subr.mxu0 0.0
    %473 = vmatpush1.xpose.msra.mxu0 0.0
    %474 = vmatprep.subr.mxu0 0.0
    %475 = vmatpush1.xpose.msra.mxu0 0.0
    %476 = vmatprep.subr.mxu0 0.0
    %477 = vmatpush1.xpose.msra.mxu0 0.0
    %478 = vmatprep.subr.mxu0 0.0
    %479 = vmatpush1.xpose.msra.mxu0 0.0
    %480 = vmatprep.subr.mxu0 0.0
    %481 = vmatpush1.xpose.msra.mxu0 0.0
    %482 = vmatprep.subr.mxu0 0.0
    %483 = vmatpush1.xpose.msra.mxu0 0.0
    %484 = vmatprep.subr.mxu0 0.0
    %485 = vmatpush1.xpose.msra.mxu0 0.0
    %486 = vmatprep.subr.mxu0 0.0
    %487 = vmatpush1.xpose.msra.mxu0 0.0
    %488 = vmatprep.subr.mxu0 0.0
    %489 = vmatpush1.xpose.msra.mxu0 0.0
    %490 = vmatprep.subr.mxu0 0.0
    %491 = vmatpush1.xpose.msra.mxu0 0.0
    %492 = vmatprep.subr.mxu0 0.0
    %493 = vmatpush1.xpose.msra.mxu0 0.0
    %494 = vmatprep.subr.mxu0 0.0
    %495 = vmatpush1.xpose.msra.mxu0 0.0
    %496 = vmatprep.subr.mxu0 0.0
    %497 = vmatpush1.xpose.msra.mxu0 0.0
    %498 = vmatprep.subr.mxu0 0.0
    %499 = vmatpush1.xpose.msra.mxu0 0.0
    %500 = vmatprep.subr.mxu0 0.0
    %501 = vmatpush1.xpose.msra.mxu0 0.0
    %502 = vmatprep.subr.mxu0 0.0
    %503 = vmatpush1.xpose.msra.mxu0 0.0
    %504 = vmatprep.subr.mxu0 0.0
    %505 = vmatpush1.xpose.msra.mxu0 0.0
    %506 = vmatprep.subr.mxu0 0.0
    %507 = vmatpush1.xpose.msra.mxu0 0.0
    %508 = vmatprep.subr.mxu0 0.0
    %509 = vmatpush1.xpose.msra.mxu0 0.0
    %510 = vmatprep.subr.mxu0 0.0
    %511 = vmatpush1.xpose.msra.mxu0 0.0
    %512 = vmatprep.subr.mxu0 0.0
    %513 = vmatpush1.xpose.msra.mxu0 0.0
    %514 = vmatprep.subr.mxu0 0.0
    %515 = vmatpush1.xpose.msra.mxu0 0.0
    %516 = vmatprep.subr.mxu0 0.0
    %517 = vmatpush1.xpose.msra.mxu0 0.0
    %518 = vmatprep.subr.mxu0 0.0
    %519 = vmatpush1.xpose.msra.mxu0 0.0
    %520 = vmatprep.subr.mxu0 0.0
    %521 = vmatpush1.xpose.msra.mxu0 0.0
    %522 = vmatprep.subr.mxu0 0.0
    %523 = vmatpush1.xpose.msra.mxu0 0.0
    %524 = vmatprep.mubr.f32.mxu0 0.0
    %525 = vmatmul.mubr.f32.gmra.mrb[0].mxu0 %v449
    %v526 = vpop.f32.mrb[0].mxu0
    %v527 = vadd.f32 0.0, %v526
    %v528 = vpop.f32.mrb[0].mxu0
    %529 = vmatprep.mubr.f32.mxu0 0.0
    %530 = vmatmul.mubr.f32.gmra.mrb[0].mxu0 %v452
    %v531 = vpop.f32.mrb[0].mxu0
    %v532 = vadd.f32 0.0, %v531
    %v533 = vpop.f32.mrb[0].mxu0
    %534 = vdwg.mxu0
    %v535 = vsel %vm413, %v527, -1e+30
    %v536 = vsel %vm414, %v532, -1e+30
    %v537 = vsel %vm335, %v535, -inf
    %538 = vmax.xlane.f32.xlu0 %v537
    %v539 = vpop.xlane.xlu0 %538
    %v540 = vsel %vm335, %v536, -inf
    %541 = vmax.xlane.f32.xlu0 %v540
    %v542 = vpop.xlane.xlu0 %541
    %v543 = vsub.f32 %v535, %v539
    %v544 = vsub.f32 %v536, %v542
    %v545 = vmul.f32 %v543, 1.442695
    %v546 = vpow.pop %v545
    %v547 = vmul.f32 %v544, 1.442695
    %v548 = vpow.pop %v547
    %v549 = vsel %vm335, %v546, 0.0
    %550 = vadd.xlane.f32.xlu0 %v549
    %v551 = vpop.xlane.xlu0 %550
    %v552 = vsel %vm335, %v548, 0.0
    %553 = vadd.xlane.f32.xlu0 %v552
    %v554 = vpop.xlane.xlu0 %553
    %v555 = vrcp.pop %v551
    %v556 = vmul.f32 %v546, %v555
    %v557 = vrcp.pop %v554
    %v558 = vmul.f32 %v548, %v557
    %561 = vrot.lane.b32.xlu0 %v279, 64
    %v562 = vpop.permute.xlu0 %561
    %563 = vrot.lane.b32.xlu0 %v285, 64
    %v564 = vpop.permute.xlu0 %563
    %v568 = vsel %vm335, %v556, 0
    %v571 = vsel %vm335, %v558, 0
    %573 = vmatprep.subr.mxu0 0.0
    %574 = vmatpush1.msra.mxu0 %v562
    %575 = vmatprep.subr.mxu0 0.0
    %576 = vmatpush1.msra.mxu0 %v564
    %577 = vmatprep.subr.mxu0 0.0
    %578 = vmatpush1.msra.mxu0 0.0
    %579 = vmatprep.subr.mxu0 0.0
    %580 = vmatpush1.msra.mxu0 0.0
    %581 = vmatprep.subr.mxu0 0.0
    %582 = vmatpush1.msra.mxu0 0.0
    %583 = vmatprep.subr.mxu0 0.0
    %584 = vmatpush1.msra.mxu0 0.0
    %585 = vmatprep.subr.mxu0 0.0
    %586 = vmatpush1.msra.mxu0 0.0
    %587 = vmatprep.subr.mxu0 0.0
    %588 = vmatpush1.msra.mxu0 0.0
    %589 = vmatprep.subr.mxu0 0.0
    %590 = vmatpush1.msra.mxu0 0.0
    %591 = vmatprep.subr.mxu0 0.0
    %592 = vmatpush1.msra.mxu0 0.0
    %593 = vmatprep.subr.mxu0 0.0
    %594 = vmatpush1.msra.mxu0 0.0
    %595 = vmatprep.subr.mxu0 0.0
    %596 = vmatpush1.msra.mxu0 0.0
    %597 = vmatprep.subr.mxu0 0.0
    %598 = vmatpush1.msra.mxu0 0.0
    %599 = vmatprep.subr.mxu0 0.0
    %600 = vmatpush1.msra.mxu0 0.0
    %601 = vmatprep.subr.mxu0 0.0
    %602 = vmatpush1.msra.mxu0 0.0
    %603 = vmatprep.subr.mxu0 0.0
    %604 = vmatpush1.msra.mxu0 0.0
    %605 = vmatprep.subr.mxu0 0.0
    %606 = vmatpush1.msra.mxu0 0.0
    %607 = vmatprep.subr.mxu0 0.0
    %608 = vmatpush1.msra.mxu0 0.0
    %609 = vmatprep.subr.mxu0 0.0
    %610 = vmatpush1.msra.mxu0 0.0
    %611 = vmatprep.subr.mxu0 0.0
    %612 = vmatpush1.msra.mxu0 0.0
    %613 = vmatprep.subr.mxu0 0.0
    %614 = vmatpush1.msra.mxu0 0.0
    %615 = vmatprep.subr.mxu0 0.0
    %616 = vmatpush1.msra.mxu0 0.0
    %617 = vmatprep.subr.mxu0 0.0
    %618 = vmatpush1.msra.mxu0 0.0
    %619 = vmatprep.subr.mxu0 0.0
    %620 = vmatpush1.msra.mxu0 0.0
    %621 = vmatprep.subr.mxu0 0.0
    %622 = vmatpush1.msra.mxu0 0.0
    %623 = vmatprep.subr.mxu0 0.0
    %624 = vmatpush1.msra.mxu0 0.0
    %625 = vmatprep.subr.mxu0 0.0
    %626 = vmatpush1.msra.mxu0 0.0
    %627 = vmatprep.subr.mxu0 0.0
    %628 = vmatpush1.msra.mxu0 0.0
    %629 = vmatprep.subr.mxu0 0.0
    %630 = vmatpush1.msra.mxu0 0.0
    %631 = vmatprep.subr.mxu0 0.0
    %632 = vmatpush1.msra.mxu0 0.0
    %633 = vmatprep.subr.mxu0 0.0
    %634 = vmatpush1.msra.mxu0 0.0
    %635 = vmatprep.subr.mxu0 0.0
    %636 = vmatpush1.msra.mxu0 0.0
    %637 = vmatprep.mubr.f32.mxu0 0.0
    %638 = vmatmul.mubr.f32.gmra.mrb[0].mxu0 %v568
    %v639 = vpop.f32.mrb[0].mxu0
    %v640 = vadd.f32 0.0, %v639
    %v641 = vpop.f32.mrb[0].mxu0
    %642 = vmatprep.mubr.f32.mxu0 0.0
    %643 = vmatmul.mubr.f32.gmra.mrb[0].mxu0 %v571
    %v644 = vpop.f32.mrb[0].mxu0
    %v645 = vadd.f32 0.0, %v644
    %v646 = vpop.f32.mrb[0].mxu0
    %647 = vdwg.mxu0
    %v648 = vmul.f32 %v277, %v339
    %v649 = vmul.f32 %v283, %v341
    %v650 = vmul.f32 %v277, %v347
    %v651 = vmul.f32 %v283, %v349
    %654 = vrot.lane.b32.xlu0 %v650, 112
    %v655 = vpop.permute.xlu0 %654
    %656 = vrot.lane.b32.xlu0 %v651, 112
    %v657 = vpop.permute.xlu0 %656
    %v660 = vsub.f32 %v648, %v655
    %v661 = vsub.f32 %v649, %v657
    %v662 = vmul.f32 %v277, %v365
    %v663 = vmul.f32 %v283, %v367
    %v664 = vmul.f32 %v277, %v373
    %v665 = vmul.f32 %v283, %v375
    %668 = vrot.lane.b32.xlu0 %v664, 16
    %v669 = vpop.permute.xlu0 %668
    %670 = vrot.lane.b32.xlu0 %v665, 16
    %v671 = vpop.permute.xlu0 %670
    %v674 = vadd.f32 %v662, %v669
    %v675 = vadd.f32 %v663, %v671
    %678 = vrot.lane.b32.xlu0 %v660, 96
    %v679 = vpop.permute.xlu0 %678
    %680 = vrot.lane.b32.xlu0 %v661, 96
    %v681 = vpop.permute.xlu0 %680
    %686 = vrot.lane.b32.xlu0 %v674, 96
    %v687 = vpop.permute.xlu0 %686
    %688 = vrot.lane.b32.xlu0 %v675, 96
    %v689 = vpop.permute.xlu0 %688
    %v692 = vsel %vm335, %v679, %v687
    %v693 = vsel %vm335, %v681, %v689
    %v694 = vmul.f32 %v692, 0.0078125
    %v695 = vmul.f32 %v693, 0.0078125
    %v697 = vsel %vm447, %v694, 0
    %v700 = vsel %vm447, %v695, 0
    %702 = vmatprep.subr.mxu0 0.0
    %703 = vmatpush1.xpose.msra.mxu0 %v455
    %704 = vmatprep.subr.mxu0 0.0
    %705 = vmatpush1.xpose.msra.mxu0 %v458
    %706 = vmatprep.subr.mxu0 0.0
    %707 = vmatpush1.xpose.msra.mxu0 0.0
    %708 = vmatprep.subr.mxu0 0.0
    %709 = vmatpush1.xpose.msra.mxu0 0.0
    %710 = vmatprep.subr.mxu0 0.0
    %711 = vmatpush1.xpose.msra.mxu0 0.0
    %712 = vmatprep.subr.mxu0 0.0
    %713 = vmatpush1.xpose.msra.mxu0 0.0
    %714 = vmatprep.subr.mxu0 0.0
    %715 = vmatpush1.xpose.msra.mxu0 0.0
    %716 = vmatprep.subr.mxu0 0.0
    %717 = vmatpush1.xpose.msra.mxu0 0.0
    %718 = vmatprep.subr.mxu0 0.0
    %719 = vmatpush1.xpose.msra.mxu0 0.0
    %720 = vmatprep.subr.mxu0 0.0
    %721 = vmatpush1.xpose.msra.mxu0 0.0
    %722 = vmatprep.subr.mxu0 0.0
    %723 = vmatpush1.xpose.msra.mxu0 0.0
    %724 = vmatprep.subr.mxu0 0.0
    %725 = vmatpush1.xpose.msra.mxu0 0.0
    %726 = vmatprep.subr.mxu0 0.0
    %727 = vmatpush1.xpose.msra.mxu0 0.0
    %728 = vmatprep.subr.mxu0 0.0
    %729 = vmatpush1.xpose.msra.mxu0 0.0
    %730 = vmatprep.subr.mxu0 0.0
    %731 = vmatpush1.xpose.msra.mxu0 0.0
    %732 = vmatprep.subr.mxu0 0.0
    %733 = vmatpush1.xpose.msra.mxu0 0.0
    %734 = vmatprep.subr.mxu0 0.0
    %735 = vmatpush1.xpose.msra.mxu0 0.0
    %736 = vmatprep.subr.mxu0 0.0
    %737 = vmatpush1.xpose.msra.mxu0 0.0
    %738 = vmatprep.subr.mxu0 0.0
    %739 = vmatpush1.xpose.msra.mxu0 0.0
    %740 = vmatprep.subr.mxu0 0.0
    %741 = vmatpush1.xpose.msra.mxu0 0.0
    %742 = vmatprep.subr.mxu0 0.0
    %743 = vmatpush1.xpose.msra.mxu0 0.0
    %744 = vmatprep.subr.mxu0 0.0
    %745 = vmatpush1.xpose.msra.mxu0 0.0
    %746 = vmatprep.subr.mxu0 0.0
    %747 = vmatpush1.xpose.msra.mxu0 0.0
    %748 = vmatprep.subr.mxu0 0.0
    %749 = vmatpush1.xpose.msra.mxu0 0.0
    %750 = vmatprep.subr.mxu0 0.0
    %751 = vmatpush1.xpose.msra.mxu0 0.0
    %752 = vmatprep.subr.mxu0 0.0
    %753 = vmatpush1.xpose.msra.mxu0 0.0
    %754 = vmatprep.subr.mxu0 0.0
    %755 = vmatpush1.xpose.msra.mxu0 0.0
    %756 = vmatprep.subr.mxu0 0.0
    %757 = vmatpush1.xpose.msra.mxu0 0.0
    %758 = vmatprep.subr.mxu0 0.0
    %759 = vmatpush1.xpose.msra.mxu0 0.0
    %760 = vmatprep.subr.mxu0 0.0
    %761 = vmatpush1.xpose.msra.mxu0 0.0
    %762 = vmatprep.subr.mxu0 0.0
    %763 = vmatpush1.xpose.msra.mxu0 0.0
    %764 = vmatprep.subr.mxu0 0.0
    %765 = vmatpush1.xpose.msra.mxu0 0.0
    %766 = vmatprep.mubr.f32.mxu0 0.0
    %767 = vmatmul.mubr.f32.gmra.mrb[0].mxu0 %v697
    %v768 = vpop.f32.mrb[0].mxu0
    %v769 = vadd.f32 0.0, %v768
    %v770 = vpop.f32.mrb[0].mxu0
    %771 = vmatprep.mubr.f32.mxu0 0.0
    %772 = vmatmul.mubr.f32.gmra.mrb[0].mxu0 %v700
    %v773 = vpop.f32.mrb[0].mxu0
    %v774 = vadd.f32 0.0, %v773
    %v775 = vpop.f32.mrb[0].mxu0
    %776 = vdwg.mxu0
    %v777 = vsel %vm413, %v769, -1e+30
    %v778 = vsel %vm414, %v774, -1e+30
    %v779 = vsel %vm335, %v777, -inf
    %780 = vmax.xlane.f32.xlu0 %v779
    %v781 = vpop.xlane.xlu0 %780
    %v782 = vsel %vm335, %v778, -inf
    %783 = vmax.xlane.f32.xlu0 %v782
    %v784 = vpop.xlane.xlu0 %783
    %v785 = vsub.f32 %v777, %v781
    %v786 = vsub.f32 %v778, %v784
    %v787 = vmul.f32 %v785, 1.442695
    %v788 = vpow.pop %v787
    %v789 = vmul.f32 %v786, 1.442695
    %v790 = vpow.pop %v789
    %v791 = vsel %vm335, %v788, 0.0
    %792 = vadd.xlane.f32.xlu0 %v791
    %v793 = vpop.xlane.xlu0 %792
    %v794 = vsel %vm335, %v790, 0.0
    %795 = vadd.xlane.f32.xlu0 %v794
    %v796 = vpop.xlane.xlu0 %795
    %v797 = vrcp.pop %v793
    %v798 = vmul.f32 %v788, %v797
    %v799 = vrcp.pop %v796
    %v800 = vmul.f32 %v790, %v799
    %v802 = vsel %vm335, %v798, 0
    %v805 = vsel %vm335, %v800, 0
    %807 = vmatprep.subr.mxu0 0.0
    %808 = vmatpush1.msra.mxu0 %v562
    %809 = vmatprep.subr.mxu0 0.0
    %810 = vmatpush1.msra.mxu0 %v564
    %811 = vmatprep.subr.mxu0 0.0
    %812 = vmatpush1.msra.mxu0 0.0
    %813 = vmatprep.subr.mxu0 0.0
    %814 = vmatpush1.msra.mxu0 0.0
    %815 = vmatprep.subr.mxu0 0.0
    %816 = vmatpush1.msra.mxu0 0.0
    %817 = vmatprep.subr.mxu0 0.0
    %818 = vmatpush1.msra.mxu0 0.0
    %819 = vmatprep.subr.mxu0 0.0
    %820 = vmatpush1.msra.mxu0 0.0
    %821 = vmatprep.subr.mxu0 0.0
    %822 = vmatpush1.msra.mxu0 0.0
    %823 = vmatprep.subr.mxu0 0.0
    %824 = vmatpush1.msra.mxu0 0.0
    %825 = vmatprep.subr.mxu0 0.0
    %826 = vmatpush1.msra.mxu0 0.0
    %827 = vmatprep.subr.mxu0 0.0
    %828 = vmatpush1.msra.mxu0 0.0
    %829 = vmatprep.subr.mxu0 0.0
    %830 = vmatpush1.msra.mxu0 0.0
    %831 = vmatprep.subr.mxu0 0.0
    %832 = vmatpush1.msra.mxu0 0.0
    %833 = vmatprep.subr.mxu0 0.0
    %834 = vmatpush1.msra.mxu0 0.0
    %835 = vmatprep.subr.mxu0 0.0
    %836 = vmatpush1.msra.mxu0 0.0
    %837 = vmatprep.subr.mxu0 0.0
    %838 = vmatpush1.msra.mxu0 0.0
    %839 = vmatprep.subr.mxu0 0.0
    %840 = vmatpush1.msra.mxu0 0.0
    %841 = vmatprep.subr.mxu0 0.0
    %842 = vmatpush1.msra.mxu0 0.0
    %843 = vmatprep.subr.mxu0 0.0
    %844 = vmatpush1.msra.mxu0 0.0
    %845 = vmatprep.subr.mxu0 0.0
    %846 = vmatpush1.msra.mxu0 0.0
    %847 = vmatprep.subr.mxu0 0.0
    %848 = vmatpush1.msra.mxu0 0.0
    %849 = vmatprep.subr.mxu0 0.0
    %850 = vmatpush1.msra.mxu0 0.0
    %851 = vmatprep.subr.mxu0 0.0
    %852 = vmatpush1.msra.mxu0 0.0
    %853 = vmatprep.subr.mxu0 0.0
    %854 = vmatpush1.msra.mxu0 0.0
    %855 = vmatprep.subr.mxu0 0.0
    %856 = vmatpush1.msra.mxu0 0.0
    %857 = vmatprep.subr.mxu0 0.0
    %858 = vmatpush1.msra.mxu0 0.0
    %859 = vmatprep.subr.mxu0 0.0
    %860 = vmatpush1.msra.mxu0 0.0
    %861 = vmatprep.subr.mxu0 0.0
    %862 = vmatpush1.msra.mxu0 0.0
    %863 = vmatprep.subr.mxu0 0.0
    %864 = vmatpush1.msra.mxu0 0.0
    %865 = vmatprep.subr.mxu0 0.0
    %866 = vmatpush1.msra.mxu0 0.0
    %867 = vmatprep.subr.mxu0 0.0
    %868 = vmatpush1.msra.mxu0 0.0
    %869 = vmatprep.subr.mxu0 0.0
    %870 = vmatpush1.msra.mxu0 0.0
    %871 = vmatprep.mubr.f32.mxu0 0.0
    %872 = vmatmul.mubr.f32.gmra.mrb[0].mxu0 %v802
    %v873 = vpop.f32.mrb[0].mxu0
    %v874 = vadd.f32 0.0, %v873
    %v875 = vpop.f32.mrb[0].mxu0
    %876 = vmatprep.mubr.f32.mxu0 0.0
    %877 = vmatmul.mubr.f32.gmra.mrb[0].mxu0 %v805
    %v878 = vpop.f32.mrb[0].mxu0
    %v879 = vadd.f32 0.0, %v878
    %v880 = vpop.f32.mrb[0].mxu0
    %881 = vdwg.mxu0
    %882 = vrot.lane.b32.xlu0 %v287, 64
    %v883 = vpop.permute.xlu0 %882
    %884 = vrot.lane.b32.xlu0 %v288, 64
    %v885 = vpop.permute.xlu0 %884
    %v888 = vmul.f32 %v277, %v883
    %v889 = vmul.f32 %v283, %v885
    %890 = vrot.lane.b32.xlu0 %v289, 80
    %v891 = vpop.permute.xlu0 %890
    %892 = vrot.lane.b32.xlu0 %v290, 80
    %v893 = vpop.permute.xlu0 %892
    %v896 = vmul.f32 %v277, %v891
    %v897 = vmul.f32 %v283, %v893
    %900 = vrot.lane.b32.xlu0 %v896, 112
    %v901 = vpop.permute.xlu0 %900
    %902 = vrot.lane.b32.xlu0 %v897, 112
    %v903 = vpop.permute.xlu0 %902
    %v906 = vsub.f32 %v888, %v901
    %v907 = vsub.f32 %v889, %v903
    %908 = vrot.lane.b32.xlu0 %v287, 80
    %v909 = vpop.permute.xlu0 %908
    %910 = vrot.lane.b32.xlu0 %v288, 80
    %v911 = vpop.permute.xlu0 %910
    %v914 = vmul.f32 %v277, %v909
    %v915 = vmul.f32 %v283, %v911
    %916 = vrot.lane.b32.xlu0 %v289, 64
    %v917 = vpop.permute.xlu0 %916
    %918 = vrot.lane.b32.xlu0 %v290, 64
    %v919 = vpop.permute.xlu0 %918
    %v922 = vmul.f32 %v277, %v917
    %v923 = vmul.f32 %v283, %v919
    %926 = vrot.lane.b32.xlu0 %v922, 16
    %v927 = vpop.permute.xlu0 %926
    %928 = vrot.lane.b32.xlu0 %v923, 16
    %v929 = vpop.permute.xlu0 %928
    %v932 = vadd.f32 %v914, %v927
    %v933 = vadd.f32 %v915, %v929
    %936 = vrot.lane.b32.xlu0 %v906, 64
    %v937 = vpop.permute.xlu0 %936
    %938 = vrot.lane.b32.xlu0 %v907, 64
    %v939 = vpop.permute.xlu0 %938
    %944 = vrot.lane.b32.xlu0 %v932, 64
    %v945 = vpop.permute.xlu0 %944
    %946 = vrot.lane.b32.xlu0 %v933, 64
    %v947 = vpop.permute.xlu0 %946
    %v950 = vsel %vm335, %v937, %v945
    %v951 = vsel %vm335, %v939, %v947
    %v952 = vmul.f32 %v950, 0.0078125
    %v953 = vmul.f32 %v951, 0.0078125
    %v955 = vsel %vm447, %v952, 0
    %v958 = vsel %vm447, %v953, 0
    %v961 = vsel %vm447, %v406, 0
    %v964 = vsel %vm447, %v407, 0
    %966 = vmatprep.subr.mxu0 0.0
    %967 = vmatpush1.xpose.msra.mxu0 %v961
    %968 = vmatprep.subr.mxu0 0.0
    %969 = vmatpush1.xpose.msra.mxu0 %v964
    %970 = vmatprep.subr.mxu0 0.0
    %971 = vmatpush1.xpose.msra.mxu0 0.0
    %972 = vmatprep.subr.mxu0 0.0
    %973 = vmatpush1.xpose.msra.mxu0 0.0
    %974 = vmatprep.subr.mxu0 0.0
    %975 = vmatpush1.xpose.msra.mxu0 0.0
    %976 = vmatprep.subr.mxu0 0.0
    %977 = vmatpush1.xpose.msra.mxu0 0.0
    %978 = vmatprep.subr.mxu0 0.0
    %979 = vmatpush1.xpose.msra.mxu0 0.0
    %980 = vmatprep.subr.mxu0 0.0
    %981 = vmatpush1.xpose.msra.mxu0 0.0
    %982 = vmatprep.subr.mxu0 0.0
    %983 = vmatpush1.xpose.msra.mxu0 0.0
    %984 = vmatprep.subr.mxu0 0.0
    %985 = vmatpush1.xpose.msra.mxu0 0.0
    %986 = vmatprep.subr.mxu0 0.0
    %987 = vmatpush1.xpose.msra.mxu0 0.0
    %988 = vmatprep.subr.mxu0 0.0
    %989 = vmatpush1.xpose.msra.mxu0 0.0
    %990 = vmatprep.subr.mxu0 0.0
    %991 = vmatpush1.xpose.msra.mxu0 0.0
    %992 = vmatprep.subr.mxu0 0.0
    %993 = vmatpush1.xpose.msra.mxu0 0.0
    %994 = vmatprep.subr.mxu0 0.0
    %995 = vmatpush1.xpose.msra.mxu0 0.0
    %996 = vmatprep.subr.mxu0 0.0
    %997 = vmatpush1.xpose.msra.mxu0 0.0
    %998 = vmatprep.subr.mxu0 0.0
    %999 = vmatpush1.xpose.msra.mxu0 0.0
    %1000 = vmatprep.subr.mxu0 0.0
    %1001 = vmatpush1.xpose.msra.mxu0 0.0
    %1002 = vmatprep.subr.mxu0 0.0
    %1003 = vmatpush1.xpose.msra.mxu0 0.0
    %1004 = vmatprep.subr.mxu0 0.0
    %1005 = vmatpush1.xpose.msra.mxu0 0.0
    %1006 = vmatprep.subr.mxu0 0.0
    %1007 = vmatpush1.xpose.msra.mxu0 0.0
    %1008 = vmatprep.subr.mxu0 0.0
    %1009 = vmatpush1.xpose.msra.mxu0 0.0
    %1010 = vmatprep.subr.mxu0 0.0
    %1011 = vmatpush1.xpose.msra.mxu0 0.0
    %1012 = vmatprep.subr.mxu0 0.0
    %1013 = vmatpush1.xpose.msra.mxu0 0.0
    %1014 = vmatprep.subr.mxu0 0.0
    %1015 = vmatpush1.xpose.msra.mxu0 0.0
    %1016 = vmatprep.subr.mxu0 0.0
    %1017 = vmatpush1.xpose.msra.mxu0 0.0
    %1018 = vmatprep.subr.mxu0 0.0
    %1019 = vmatpush1.xpose.msra.mxu0 0.0
    %1020 = vmatprep.subr.mxu0 0.0
    %1021 = vmatpush1.xpose.msra.mxu0 0.0
    %1022 = vmatprep.subr.mxu0 0.0
    %1023 = vmatpush1.xpose.msra.mxu0 0.0
    %1024 = vmatprep.subr.mxu0 0.0
    %1025 = vmatpush1.xpose.msra.mxu0 0.0
    %1026 = vmatprep.subr.mxu0 0.0
    %1027 = vmatpush1.xpose.msra.mxu0 0.0
    %1028 = vmatprep.subr.mxu0 0.0
    %1029 = vmatpush1.xpose.msra.mxu0 0.0
    %1030 = vmatprep.mubr.f32.mxu0 0.0
    %1031 = vmatmul.mubr.f32.gmra.mrb[0].mxu0 %v955
    %v1032 = vpop.f32.mrb[0].mxu0
    %v1033 = vadd.f32 0.0, %v1032
    %v1034 = vpop.f32.mrb[0].mxu0
    %1035 = vmatprep.mubr.f32.mxu0 0.0
    %1036 = vmatmul.mubr.f32.gmra.mrb[0].mxu0 %v958
    %v1037 = vpop.f32.mrb[0].mxu0
    %v1038 = vadd.f32 0.0, %v1037
    %v1039 = vpop.f32.mrb[0].mxu0
    %1040 = vdwg.mxu0
    %v1041 = vsel %vm413, %v1033, -1e+30
    %v1042 = vsel %vm414, %v1038, -1e+30
    %v1043 = vsel %vm335, %v1041, -inf
    %1044 = vmax.xlane.f32.xlu0 %v1043
    %v1045 = vpop.xlane.xlu0 %1044
    %v1046 = vsel %vm335, %v1042, -inf
    %1047 = vmax.xlane.f32.xlu0 %v1046
    %v1048 = vpop.xlane.xlu0 %1047
    %v1049 = vsub.f32 %v1041, %v1045
    %v1050 = vsub.f32 %v1042, %v1048
    %v1051 = vmul.f32 %v1049, 1.442695
    %v1052 = vpow.pop %v1051
    %v1053 = vmul.f32 %v1050, 1.442695
    %v1054 = vpow.pop %v1053
    %v1055 = vsel %vm335, %v1052, 0.0
    %1056 = vadd.xlane.f32.xlu0 %v1055
    %v1057 = vpop.xlane.xlu0 %1056
    %v1058 = vsel %vm335, %v1054, 0.0
    %1059 = vadd.xlane.f32.xlu0 %v1058
    %v1060 = vpop.xlane.xlu0 %1059
    %v1061 = vrcp.pop %v1057
    %v1062 = vmul.f32 %v1052, %v1061
    %v1063 = vrcp.pop %v1060
    %v1064 = vmul.f32 %v1054, %v1063
    %1065 = vrot.lane.b32.xlu0 %v279, 32
    %v1066 = vpop.permute.xlu0 %1065
    %1067 = vrot.lane.b32.xlu0 %v285, 32
    %v1068 = vpop.permute.xlu0 %1067
    %v1072 = vsel %vm335, %v1062, 0
    %v1075 = vsel %vm335, %v1064, 0
    %1077 = vmatprep.subr.mxu0 0.0
    %1078 = vmatpush1.msra.mxu0 %v1066
    %1079 = vmatprep.subr.mxu0 0.0
    %1080 = vmatpush1.msra.mxu0 %v1068
    %1081 = vmatprep.subr.mxu0 0.0
    %1082 = vmatpush1.msra.mxu0 0.0
    %1083 = vmatprep.subr.mxu0 0.0
    %1084 = vmatpush1.msra.mxu0 0.0
    %1085 = vmatprep.subr.mxu0 0.0
    %1086 = vmatpush1.msra.mxu0 0.0
    %1087 = vmatprep.subr.mxu0 0.0
    %1088 = vmatpush1.msra.mxu0 0.0
    %1089 = vmatprep.subr.mxu0 0.0
    %1090 = vmatpush1.msra.mxu0 0.0
    %1091 = vmatprep.subr.mxu0 0.0
    %1092 = vmatpush1.msra.mxu0 0.0
    %1093 = vmatprep.subr.mxu0 0.0
    %1094 = vmatpush1.msra.mxu0 0.0
    %1095 = vmatprep.subr.mxu0 0.0
    %1096 = vmatpush1.msra.mxu0 0.0
    %1097 = vmatprep.subr.mxu0 0.0
    %1098 = vmatpush1.msra.mxu0 0.0
    %1099 = vmatprep.subr.mxu0 0.0
    %1100 = vmatpush1.msra.mxu0 0.0
    %1101 = vmatprep.subr.mxu0 0.0
    %1102 = vmatpush1.msra.mxu0 0.0
    %1103 = vmatprep.subr.mxu0 0.0
    %1104 = vmatpush1.msra.mxu0 0.0
    %1105 = vmatprep.subr.mxu0 0.0
    %1106 = vmatpush1.msra.mxu0 0.0
    %1107 = vmatprep.subr.mxu0 0.0
    %1108 = vmatpush1.msra.mxu0 0.0
    %1109 = vmatprep.subr.mxu0 0.0
    %1110 = vmatpush1.msra.mxu0 0.0
    %1111 = vmatprep.subr.mxu0 0.0
    %1112 = vmatpush1.msra.mxu0 0.0
    %1113 = vmatprep.subr.mxu0 0.0
    %1114 = vmatpush1.msra.mxu0 0.0
    %1115 = vmatprep.subr.mxu0 0.0
    %1116 = vmatpush1.msra.mxu0 0.0
    %1117 = vmatprep.subr.mxu0 0.0
    %1118 = vmatpush1.msra.mxu0 0.0
    %1119 = vmatprep.subr.mxu0 0.0
    %1120 = vmatpush1.msra.mxu0 0.0
    %1121 = vmatprep.subr.mxu0 0.0
    %1122 = vmatpush1.msra.mxu0 0.0
    %1123 = vmatprep.subr.mxu0 0.0
    %1124 = vmatpush1.msra.mxu0 0.0
    %1125 = vmatprep.subr.mxu0 0.0
    %1126 = vmatpush1.msra.mxu0 0.0
    %1127 = vmatprep.subr.mxu0 0.0
    %1128 = vmatpush1.msra.mxu0 0.0
    %1129 = vmatprep.subr.mxu0 0.0
    %1130 = vmatpush1.msra.mxu0 0.0
    %1131 = vmatprep.subr.mxu0 0.0
    %1132 = vmatpush1.msra.mxu0 0.0
    %1133 = vmatprep.subr.mxu0 0.0
    %1134 = vmatpush1.msra.mxu0 0.0
    %1135 = vmatprep.subr.mxu0 0.0
    %1136 = vmatpush1.msra.mxu0 0.0
    %1137 = vmatprep.subr.mxu0 0.0
    %1138 = vmatpush1.msra.mxu0 0.0
    %1139 = vmatprep.subr.mxu0 0.0
    %1140 = vmatpush1.msra.mxu0 0.0
    %1141 = vmatprep.mubr.f32.mxu0 0.0
    %1142 = vmatmul.mubr.f32.gmra.mrb[0].mxu0 %v1072
    %v1143 = vpop.f32.mrb[0].mxu0
    %v1144 = vadd.f32 0.0, %v1143
    %v1145 = vpop.f32.mrb[0].mxu0
    %1146 = vmatprep.mubr.f32.mxu0 0.0
    %1147 = vmatmul.mubr.f32.gmra.mrb[0].mxu0 %v1075
    %v1148 = vpop.f32.mrb[0].mxu0
    %v1149 = vadd.f32 0.0, %v1148
    %v1150 = vpop.f32.mrb[0].mxu0
    %1151 = vdwg.mxu0
    %1152 = vrot.lane.b32.xlu0 %v287, 96
    %v1153 = vpop.permute.xlu0 %1152
    %1154 = vrot.lane.b32.xlu0 %v288, 96
    %v1155 = vpop.permute.xlu0 %1154
    %v1158 = vmul.f32 %v277, %v1153
    %v1159 = vmul.f32 %v283, %v1155
    %1160 = vrot.lane.b32.xlu0 %v289, 112
    %v1161 = vpop.permute.xlu0 %1160
    %1162 = vrot.lane.b32.xlu0 %v290, 112
    %v1163 = vpop.permute.xlu0 %1162
    %v1166 = vmul.f32 %v277, %v1161
    %v1167 = vmul.f32 %v283, %v1163
    %1170 = vrot.lane.b32.xlu0 %v1166, 112
    %v1171 = vpop.permute.xlu0 %1170
    %1172 = vrot.lane.b32.xlu0 %v1167, 112
    %v1173 = vpop.permute.xlu0 %1172
    %v1176 = vsub.f32 %v1158, %v1171
    %v1177 = vsub.f32 %v1159, %v1173
    %1178 = vrot.lane.b32.xlu0 %v287, 112
    %v1179 = vpop.permute.xlu0 %1178
    %1180 = vrot.lane.b32.xlu0 %v288, 112
    %v1181 = vpop.permute.xlu0 %1180
    %v1184 = vmul.f32 %v277, %v1179
    %v1185 = vmul.f32 %v283, %v1181
    %1186 = vrot.lane.b32.xlu0 %v289, 96
    %v1187 = vpop.permute.xlu0 %1186
    %1188 = vrot.lane.b32.xlu0 %v290, 96
    %v1189 = vpop.permute.xlu0 %1188
    %v1192 = vmul.f32 %v277, %v1187
    %v1193 = vmul.f32 %v283, %v1189
    %1196 = vrot.lane.b32.xlu0 %v1192, 16
    %v1197 = vpop.permute.xlu0 %1196
    %1198 = vrot.lane.b32.xlu0 %v1193, 16
    %v1199 = vpop.permute.xlu0 %1198
    %v1202 = vadd.f32 %v1184, %v1197
    %v1203 = vadd.f32 %v1185, %v1199
    %1206 = vrot.lane.b32.xlu0 %v1176, 32
    %v1207 = vpop.permute.xlu0 %1206
    %1208 = vrot.lane.b32.xlu0 %v1177, 32
    %v1209 = vpop.permute.xlu0 %1208
    %1214 = vrot.lane.b32.xlu0 %v1202, 32
    %v1215 = vpop.permute.xlu0 %1214
    %1216 = vrot.lane.b32.xlu0 %v1203, 32
    %v1217 = vpop.permute.xlu0 %1216
    %v1220 = vsel %vm335, %v1207, %v1215
    %v1221 = vsel %vm335, %v1209, %v1217
    %v1222 = vmul.f32 %v1220, 0.0078125
    %v1223 = vmul.f32 %v1221, 0.0078125
    %v1225 = vsel %vm447, %v1222, 0
    %v1228 = vsel %vm447, %v1223, 0
    %1230 = vmatprep.subr.mxu0 0.0
    %1231 = vmatpush1.xpose.msra.mxu0 %v961
    %1232 = vmatprep.subr.mxu0 0.0
    %1233 = vmatpush1.xpose.msra.mxu0 %v964
    %1234 = vmatprep.subr.mxu0 0.0
    %1235 = vmatpush1.xpose.msra.mxu0 0.0
    %1236 = vmatprep.subr.mxu0 0.0
    %1237 = vmatpush1.xpose.msra.mxu0 0.0
    %1238 = vmatprep.subr.mxu0 0.0
    %1239 = vmatpush1.xpose.msra.mxu0 0.0
    %1240 = vmatprep.subr.mxu0 0.0
    %1241 = vmatpush1.xpose.msra.mxu0 0.0
    %1242 = vmatprep.subr.mxu0 0.0
    %1243 = vmatpush1.xpose.msra.mxu0 0.0
    %1244 = vmatprep.subr.mxu0 0.0
    %1245 = vmatpush1.xpose.msra.mxu0 0.0
    %1246 = vmatprep.subr.mxu0 0.0
    %1247 = vmatpush1.xpose.msra.mxu0 0.0
    %1248 = vmatprep.subr.mxu0 0.0
    %1249 = vmatpush1.xpose.msra.mxu0 0.0
    %1250 = vmatprep.subr.mxu0 0.0
    %1251 = vmatpush1.xpose.msra.mxu0 0.0
    %1252 = vmatprep.subr.mxu0 0.0
    %1253 = vmatpush1.xpose.msra.mxu0 0.0
    %1254 = vmatprep.subr.mxu0 0.0
    %1255 = vmatpush1.xpose.msra.mxu0 0.0
    %1256 = vmatprep.subr.mxu0 0.0
    %1257 = vmatpush1.xpose.msra.mxu0 0.0
    %1258 = vmatprep.subr.mxu0 0.0
    %1259 = vmatpush1.xpose.msra.mxu0 0.0
    %1260 = vmatprep.subr.mxu0 0.0
    %1261 = vmatpush1.xpose.msra.mxu0 0.0
    %1262 = vmatprep.subr.mxu0 0.0
    %1263 = vmatpush1.xpose.msra.mxu0 0.0
    %1264 = vmatprep.subr.mxu0 0.0
    %1265 = vmatpush1.xpose.msra.mxu0 0.0
    %1266 = vmatprep.subr.mxu0 0.0
    %1267 = vmatpush1.xpose.msra.mxu0 0.0
    %1268 = vmatprep.subr.mxu0 0.0
    %1269 = vmatpush1.xpose.msra.mxu0 0.0
    %1270 = vmatprep.subr.mxu0 0.0
    %1271 = vmatpush1.xpose.msra.mxu0 0.0
    %1272 = vmatprep.subr.mxu0 0.0
    %1273 = vmatpush1.xpose.msra.mxu0 0.0
    %1274 = vmatprep.subr.mxu0 0.0
    %1275 = vmatpush1.xpose.msra.mxu0 0.0
    %1276 = vmatprep.subr.mxu0 0.0
    %1277 = vmatpush1.xpose.msra.mxu0 0.0
    %1278 = vmatprep.subr.mxu0 0.0
    %1279 = vmatpush1.xpose.msra.mxu0 0.0
    %1280 = vmatprep.subr.mxu0 0.0
    %1281 = vmatpush1.xpose.msra.mxu0 0.0
    %1282 = vmatprep.subr.mxu0 0.0
    %1283 = vmatpush1.xpose.msra.mxu0 0.0
    %1284 = vmatprep.subr.mxu0 0.0
    %1285 = vmatpush1.xpose.msra.mxu0 0.0
    %1286 = vmatprep.subr.mxu0 0.0
    %1287 = vmatpush1.xpose.msra.mxu0 0.0
    %1288 = vmatprep.subr.mxu0 0.0
    %1289 = vmatpush1.xpose.msra.mxu0 0.0
    %1290 = vmatprep.subr.mxu0 0.0
    %1291 = vmatpush1.xpose.msra.mxu0 0.0
    %1292 = vmatprep.subr.mxu0 0.0
    %1293 = vmatpush1.xpose.msra.mxu0 0.0
    %1294 = vmatprep.mubr.f32.mxu0 0.0
    %1295 = vmatmul.mubr.f32.gmra.mrb[0].mxu0 %v1225
    %v1296 = vpop.f32.mrb[0].mxu0
    %v1297 = vadd.f32 0.0, %v1296
    %v1298 = vpop.f32.mrb[0].mxu0
    %1299 = vmatprep.mubr.f32.mxu0 0.0
    %1300 = vmatmul.mubr.f32.gmra.mrb[0].mxu0 %v1228
    %v1301 = vpop.f32.mrb[0].mxu0
    %v1302 = vadd.f32 0.0, %v1301
    %v1303 = vpop.f32.mrb[0].mxu0
    %1304 = vdwg.mxu0
    %v1305 = vsel %vm413, %v1297, -1e+30
    %v1306 = vsel %vm414, %v1302, -1e+30
    %v1307 = vsel %vm335, %v1305, -inf
    %1308 = vmax.xlane.f32.xlu0 %v1307
    %v1309 = vpop.xlane.xlu0 %1308
    %v1310 = vsel %vm335, %v1306, -inf
    %1311 = vmax.xlane.f32.xlu0 %v1310
    %v1312 = vpop.xlane.xlu0 %1311
    %v1313 = vsub.f32 %v1305, %v1309
    %v1314 = vsub.f32 %v1306, %v1312
    %v1315 = vmul.f32 %v1313, 1.442695
    %v1316 = vpow.pop %v1315
    %v1317 = vmul.f32 %v1314, 1.442695
    %v1318 = vpow.pop %v1317
    %v1319 = vsel %vm335, %v1316, 0.0
    %1320 = vadd.xlane.f32.xlu0 %v1319
    %v1321 = vpop.xlane.xlu0 %1320
    %v1322 = vsel %vm335, %v1318, 0.0
    %1323 = vadd.xlane.f32.xlu0 %v1322
    %v1324 = vpop.xlane.xlu0 %1323
    %v1325 = vrcp.pop %v1321
    %v1326 = vmul.f32 %v1316, %v1325
    %v1327 = vrcp.pop %v1324
    %v1328 = vmul.f32 %v1318, %v1327
    %v1330 = vsel %vm335, %v1326, 0
    %v1333 = vsel %vm335, %v1328, 0
    %1335 = vmatprep.subr.mxu0 0.0
    %1336 = vmatpush1.msra.mxu0 %v1066
    %1337 = vmatprep.subr.mxu0 0.0
    %1338 = vmatpush1.msra.mxu0 %v1068
    %1339 = vmatprep.subr.mxu0 0.0
    %1340 = vmatpush1.msra.mxu0 0.0
    %1341 = vmatprep.subr.mxu0 0.0
    %1342 = vmatpush1.msra.mxu0 0.0
    %1343 = vmatprep.subr.mxu0 0.0
    %1344 = vmatpush1.msra.mxu0 0.0
    %1345 = vmatprep.subr.mxu0 0.0
    %1346 = vmatpush1.msra.mxu0 0.0
    %1347 = vmatprep.subr.mxu0 0.0
    %1348 = vmatpush1.msra.mxu0 0.0
    %1349 = vmatprep.subr.mxu0 0.0
    %1350 = vmatpush1.msra.mxu0 0.0
    %1351 = vmatprep.subr.mxu0 0.0
    %1352 = vmatpush1.msra.mxu0 0.0
    %1353 = vmatprep.subr.mxu0 0.0
    %1354 = vmatpush1.msra.mxu0 0.0
    %1355 = vmatprep.subr.mxu0 0.0
    %1356 = vmatpush1.msra.mxu0 0.0
    %1357 = vmatprep.subr.mxu0 0.0
    %1358 = vmatpush1.msra.mxu0 0.0
    %1359 = vmatprep.subr.mxu0 0.0
    %1360 = vmatpush1.msra.mxu0 0.0
    %1361 = vmatprep.subr.mxu0 0.0
    %1362 = vmatpush1.msra.mxu0 0.0
    %1363 = vmatprep.subr.mxu0 0.0
    %1364 = vmatpush1.msra.mxu0 0.0
    %1365 = vmatprep.subr.mxu0 0.0
    %1366 = vmatpush1.msra.mxu0 0.0
    %1367 = vmatprep.subr.mxu0 0.0
    %1368 = vmatpush1.msra.mxu0 0.0
    %1369 = vmatprep.subr.mxu0 0.0
    %1370 = vmatpush1.msra.mxu0 0.0
    %1371 = vmatprep.subr.mxu0 0.0
    %1372 = vmatpush1.msra.mxu0 0.0
    %1373 = vmatprep.subr.mxu0 0.0
    %1374 = vmatpush1.msra.mxu0 0.0
    %1375 = vmatprep.subr.mxu0 0.0
    %1376 = vmatpush1.msra.mxu0 0.0
    %1377 = vmatprep.subr.mxu0 0.0
    %1378 = vmatpush1.msra.mxu0 0.0
    %1379 = vmatprep.subr.mxu0 0.0
    %1380 = vmatpush1.msra.mxu0 0.0
    %1381 = vmatprep.subr.mxu0 0.0
    %1382 = vmatpush1.msra.mxu0 0.0
    %1383 = vmatprep.subr.mxu0 0.0
    %1384 = vmatpush1.msra.mxu0 0.0
    %1385 = vmatprep.subr.mxu0 0.0
    %1386 = vmatpush1.msra.mxu0 0.0
    %1387 = vmatprep.subr.mxu0 0.0
    %1388 = vmatpush1.msra.mxu0 0.0
    %1389 = vmatprep.subr.mxu0 0.0
    %1390 = vmatpush1.msra.mxu0 0.0
    %1391 = vmatprep.subr.mxu0 0.0
    %1392 = vmatpush1.msra.mxu0 0.0
    %1393 = vmatprep.subr.mxu0 0.0
    %1394 = vmatpush1.msra.mxu0 0.0
    %1395 = vmatprep.subr.mxu0 0.0
    %1396 = vmatpush1.msra.mxu0 0.0
    %1397 = vmatprep.subr.mxu0 0.0
    %1398 = vmatpush1.msra.mxu0 0.0
    %1399 = vmatprep.mubr.f32.mxu0 0.0
    %1400 = vmatmul.mubr.f32.gmra.mrb[0].mxu0 %v1330
    %v1401 = vpop.f32.mrb[0].mxu0
    %v1402 = vadd.f32 0.0, %v1401
    %v1403 = vpop.f32.mrb[0].mxu0
    %1404 = vmatprep.mubr.f32.mxu0 0.0
    %1405 = vmatmul.mubr.f32.gmra.mrb[0].mxu0 %v1333
    %v1406 = vpop.f32.mrb[0].mxu0
    %v1407 = vadd.f32 0.0, %v1406
    %v1408 = vpop.f32.mrb[0].mxu0
    %1409 = vdwg.mxu0
    %1412 = vrot.lane.b32.xlu0 %v874, 32
    %v1413 = vpop.permute.xlu0 %1412
    %1414 = vrot.lane.b32.xlu0 %v879, 32
    %v1415 = vpop.permute.xlu0 %1414
    %1420 = vrot.lane.b32.xlu0 %v1144, 64
    %v1421 = vpop.permute.xlu0 %1420
    %1422 = vrot.lane.b32.xlu0 %v1149, 64
    %v1423 = vpop.permute.xlu0 %1422
    %1428 = vrot.lane.b32.xlu0 %v1402, 96
    %v1429 = vpop.permute.xlu0 %1428
    %1430 = vrot.lane.b32.xlu0 %v1407, 96
    %v1431 = vpop.permute.xlu0 %1430
    %v1434 = vsel %vm447, %v640, %v1413
    %v1435 = vsel %vm447, %v645, %v1415
    %vm1436 = vcmask 523264
    %v1437 = vsel %vm1436, %v1434, %v1421
    %v1438 = vsel %vm1436, %v1435, %v1423
    %vm1439 = vcmask 785408
    %v1440 = vsel %vm1439, %v1437, %v1429
    %v1441 = vsel %vm1439, %v1438, %v1431
    %v1442 = vld [vmem:[#allocation11] sm:$0xff]
    %v1443 = vld [vmem:[#allocation11 + $0x8] sm:$0xff]
    %v1444 = vld [vmem:[#allocation11 + $0x10] sm:$0xff]
    %v1445 = vld [vmem:[#allocation11 + $0x18] sm:$0xff]
    %v1446 = vld [vmem:[#allocation11 + $0x20] sm:$0xff]
    %v1447 = vld [vmem:[#allocation11 + $0x28] sm:$0xff]
    %v1448 = vld [vmem:[#allocation11 + $0x30] sm:$0xff]
    %v1449 = vld [vmem:[#allocation11 + $0x38] sm:$0xff]
    %v1450 = vld [vmem:[#allocation11 + $0x40] sm:$0xff]
    %v1451 = vld [vmem:[#allocation11 + $0x48] sm:$0xff]
    %v1452 = vld [vmem:[#allocation11 + $0x50] sm:$0xff]
    %v1453 = vld [vmem:[#allocation11 + $0x58] sm:$0xff]
    %v1454 = vld [vmem:[#allocation11 + $0x60] sm:$0xff]
    %v1455 = vld [vmem:[#allocation11 + $0x68] sm:$0xff]
    %v1456 = vld [vmem:[#allocation11 + $0x70] sm:$0xff]
    %v1457 = vld [vmem:[#allocation11 + $0x78] sm:$0xff]
    %1458 = vmatprep.subr.mxu0 0.0
    %1459 = vmatpush1.msra.mxu0 %v1442
    %1460 = vmatprep.subr.mxu0 0.0
    %1461 = vmatpush1.msra.mxu0 %v1443
    %1462 = vmatprep.subr.mxu0 0.0
    %1463 = vmatpush1.msra.mxu0 %v1444
    %1464 = vmatprep.subr.mxu0 0.0
    %1465 = vmatpush1.msra.mxu0 %v1445
    %1466 = vmatprep.subr.mxu0 0.0
    %1467 = vmatpush1.msra.mxu0 %v1446
    %1468 = vmatprep.subr.mxu0 0.0
    %1469 = vmatpush1.msra.mxu0 %v1447
    %1470 = vmatprep.subr.mxu0 0.0
    %1471 = vmatpush1.msra.mxu0 %v1448
    %1472 = vmatprep.subr.mxu0 0.0
    %1473 = vmatpush1.msra.mxu0 %v1449
    %1474 = vmatprep.subr.mxu0 0.0
    %1475 = vmatpush1.msra.mxu0 %v1450
    %1476 = vmatprep.subr.mxu0 0.0
    %1477 = vmatpush1.msra.mxu0 %v1451
    %1478 = vmatprep.subr.mxu0 0.0
    %1479 = vmatpush1.msra.mxu0 %v1452
    %1480 = vmatprep.subr.mxu0 0.0
    %1481 = vmatpush1.msra.mxu0 %v1453
    %1482 = vmatprep.subr.mxu0 0.0
    %1483 = vmatpush1.msra.mxu0 %v1454
    %1484 = vmatprep.subr.mxu0 0.0
    %1485 = vmatpush1.msra.mxu0 %v1455
    %1486 = vmatprep.subr.mxu0 0.0
    %1487 = vmatpush1.msra.mxu0 %v1456
    %1488 = vmatprep.subr.mxu0 0.0
    %1489 = vmatpush1.msra.mxu0 %v1457
    %1490 = vmatprep.subr.mxu0 0.0
    %1491 = vmatpush1.msra.mxu0 0.0
    %1492 = vmatprep.subr.mxu0 0.0
    %1493 = vmatpush1.msra.mxu0 0.0
    %1494 = vmatprep.subr.mxu0 0.0
    %1495 = vmatpush1.msra.mxu0 0.0
    %1496 = vmatprep.subr.mxu0 0.0
    %1497 = vmatpush1.msra.mxu0 0.0
    %1498 = vmatprep.subr.mxu0 0.0
    %1499 = vmatpush1.msra.mxu0 0.0
    %1500 = vmatprep.subr.mxu0 0.0
    %1501 = vmatpush1.msra.mxu0 0.0
    %1502 = vmatprep.subr.mxu0 0.0
    %1503 = vmatpush1.msra.mxu0 0.0
    %1504 = vmatprep.subr.mxu0 0.0
    %1505 = vmatpush1.msra.mxu0 0.0
    %1506 = vmatprep.subr.mxu0 0.0
    %1507 = vmatpush1.msra.mxu0 0.0
    %1508 = vmatprep.subr.mxu0 0.0
    %1509 = vmatpush1.msra.mxu0 0.0
    %1510 = vmatprep.subr.mxu0 0.0
    %1511 = vmatpush1.msra.mxu0 0.0
    %1512 = vmatprep.subr.mxu0 0.0
    %1513 = vmatpush1.msra.mxu0 0.0
    %1514 = vmatprep.subr.mxu0 0.0
    %1515 = vmatpush1.msra.mxu0 0.0
    %1516 = vmatprep.subr.mxu0 0.0
    %1517 = vmatpush1.msra.mxu0 0.0
    %1518 = vmatprep.subr.mxu0 0.0
    %1519 = vmatpush1.msra.mxu0 0.0
    %1520 = vmatprep.subr.mxu0 0.0
    %1521 = vmatpush1.msra.mxu0 0.0
    %1522 = vmatprep.mubr.f32.mxu0 0.0
    %1523 = vmatmul.mubr.f32.gmra.mrb[0].mxu0 %v1440
    %v1524 = vpop.f32.mrb[0].mxu0
    %v1525 = vadd.f32 0.0, %v1524
    %v1526 = vpop.f32.mrb[0].mxu0
    %1527 = vmatprep.mubr.f32.mxu0 0.0
    %1528 = vmatmul.mubr.f32.gmra.mrb[0].mxu0 %v1441
    %v1529 = vpop.f32.mrb[0].mxu0
    %v1530 = vadd.f32 0.0, %v1529
    %v1531 = vpop.f32.mrb[0].mxu0
    %1532 = vdwg.mxu0
    %v1533 = vmul.f32 %v1525, 0.22
    %v1534 = vmul.f32 %v1530, 0.22
    %v1535 = vadd.f32 %v1533, %v152
    %v1536 = vadd.f32 %v1534, %v153
    %1537 = vst [vmem:[#allocation17] sm:$0xff] %v1535
    %1538 = vst [vmem:[#allocation17 + $0x8] sm:$0xff] %v1536
    %v1539 = vmul.f32 %v1535, %v1535
    %v1540 = vmul.f32 %v1536, %v1536
    %1541 = vadd.xlane.f32.xlu0 %v1539
    %v1542 = vpop.xlane.xlu0 %1541
    %1543 = vadd.xlane.f32.xlu0 %v1540
    %v1544 = vpop.xlane.xlu0 %1543
    %v1545 = vmul.f32 %v1542, %v160
    %v1546 = vmul.f32 %v1544, %v160
    %v1547 = vadd.f32 %v1545, 1e-06
    %v1548 = vadd.f32 %v1546, 1e-06
    %v1549 = vrsqrt.pop %v1547
    %v1550 = vrsqrt.pop %v1548
    %v1551 = vmul.f32 %v1535, %v1549
    %v1552 = vmul.f32 %v1536, %v1550
    %v1553 = vld [vmem:[%s5] sm:$0x1]
    %v1555 = vlaneseq
    %v1556 = vshrl.u32 %v1555, 7
    %v1557 = vsub.s32 0, %v1556
    %v1558 = vrot.slane %v1553, %v1557
    %v1560 = vmul.f32 %v1551, %v1558
    %v1561 = vmul.f32 %v1552, %v1558
    %v1562 = vld [vmem:[#allocation13] sm:$0xff]
    %v1563 = vld [vmem:[#allocation13 + $0x8] sm:$0xff]
    %v1564 = vld [vmem:[#allocation13 + $0x10] sm:$0xff]
    %v1565 = vld [vmem:[#allocation13 + $0x18] sm:$0xff]
    %v1566 = vld [vmem:[#allocation13 + $0x20] sm:$0xff]
    %v1567 = vld [vmem:[#allocation13 + $0x28] sm:$0xff]
    %v1568 = vld [vmem:[#allocation13 + $0x30] sm:$0xff]
    %v1569 = vld [vmem:[#allocation13 + $0x38] sm:$0xff]
    %v1570 = vld [vmem:[#allocation13 + $0x40] sm:$0xff]
    %v1571 = vld [vmem:[#allocation13 + $0x48] sm:$0xff]
    %v1572 = vld [vmem:[#allocation13 + $0x50] sm:$0xff]
    %v1573 = vld [vmem:[#allocation13 + $0x58] sm:$0xff]
    %v1574 = vld [vmem:[#allocation13 + $0x60] sm:$0xff]
    %v1575 = vld [vmem:[#allocation13 + $0x68] sm:$0xff]
    %v1576 = vld [vmem:[#allocation13 + $0x70] sm:$0xff]
    %v1577 = vld [vmem:[#allocation13 + $0x78] sm:$0xff]
    %v1578 = vld [vmem:[#allocation13 + $0x80] sm:$0xff]
    %v1579 = vld [vmem:[#allocation13 + $0x88] sm:$0xff]
    %v1580 = vld [vmem:[#allocation13 + $0x90] sm:$0xff]
    %v1581 = vld [vmem:[#allocation13 + $0x98] sm:$0xff]
    %v1582 = vld [vmem:[#allocation13 + $0xa0] sm:$0xff]
    %v1583 = vld [vmem:[#allocation13 + $0xa8] sm:$0xff]
    %v1584 = vld [vmem:[#allocation13 + $0xb0] sm:$0xff]
    %v1585 = vld [vmem:[#allocation13 + $0xb8] sm:$0xff]
    %v1586 = vld [vmem:[#allocation13 + $0xc0] sm:$0xff]
    %v1587 = vld [vmem:[#allocation13 + $0xc8] sm:$0xff]
    %v1588 = vld [vmem:[#allocation13 + $0xd0] sm:$0xff]
    %v1589 = vld [vmem:[#allocation13 + $0xd8] sm:$0xff]
    %v1590 = vld [vmem:[#allocation13 + $0xe0] sm:$0xff]
    %v1591 = vld [vmem:[#allocation13 + $0xe8] sm:$0xff]
    %v1592 = vld [vmem:[#allocation13 + $0xf0] sm:$0xff]
    %v1593 = vld [vmem:[#allocation13 + $0xf8] sm:$0xff]
    %v1594 = vld [vmem:[#allocation13 + $0x100] sm:$0xff]
    %v1595 = vld [vmem:[#allocation13 + $0x108] sm:$0xff]
    %v1596 = vld [vmem:[#allocation13 + $0x110] sm:$0xff]
    %v1597 = vld [vmem:[#allocation13 + $0x118] sm:$0xff]
    %v1598 = vld [vmem:[#allocation13 + $0x120] sm:$0xff]
    %v1599 = vld [vmem:[#allocation13 + $0x128] sm:$0xff]
    %v1600 = vld [vmem:[#allocation13 + $0x130] sm:$0xff]
    %v1601 = vld [vmem:[#allocation13 + $0x138] sm:$0xff]
    %v1602 = vld [vmem:[#allocation13 + $0x140] sm:$0xff]
    %v1603 = vld [vmem:[#allocation13 + $0x148] sm:$0xff]
    %v1604 = vld [vmem:[#allocation13 + $0x150] sm:$0xff]
    %v1605 = vld [vmem:[#allocation13 + $0x158] sm:$0xff]
    %v1606 = vld [vmem:[#allocation13 + $0x160] sm:$0xff]
    %v1607 = vld [vmem:[#allocation13 + $0x168] sm:$0xff]
    %v1608 = vld [vmem:[#allocation13 + $0x170] sm:$0xff]
    %v1609 = vld [vmem:[#allocation13 + $0x178] sm:$0xff]
    %v1610 = vld [vmem:[#allocation13 + $0x180] sm:$0xff]
    %v1611 = vld [vmem:[#allocation13 + $0x188] sm:$0xff]
    %v1612 = vld [vmem:[#allocation13 + $0x190] sm:$0xff]
    %v1613 = vld [vmem:[#allocation13 + $0x198] sm:$0xff]
    %v1614 = vld [vmem:[#allocation13 + $0x1a0] sm:$0xff]
    %v1615 = vld [vmem:[#allocation13 + $0x1a8] sm:$0xff]
    %v1616 = vld [vmem:[#allocation13 + $0x1b0] sm:$0xff]
    %v1617 = vld [vmem:[#allocation13 + $0x1b8] sm:$0xff]
    %v1618 = vld [vmem:[#allocation13 + $0x1c0] sm:$0xff]
    %v1619 = vld [vmem:[#allocation13 + $0x1c8] sm:$0xff]
    %v1620 = vld [vmem:[#allocation13 + $0x1d0] sm:$0xff]
    %v1621 = vld [vmem:[#allocation13 + $0x1d8] sm:$0xff]
    %v1622 = vld [vmem:[#allocation13 + $0x1e0] sm:$0xff]
    %v1623 = vld [vmem:[#allocation13 + $0x1e8] sm:$0xff]
    %v1624 = vld [vmem:[#allocation13 + $0x1f0] sm:$0xff]
    %v1625 = vld [vmem:[#allocation13 + $0x1f8] sm:$0xff]
    %1626 = vmatprep.subr.mxu0 %v1563
    %1627 = vmatpush1.msra.mxu0 %v1562
    %1628 = vmatprep.subr.mxu0 %v1567
    %1629 = vmatpush1.msra.mxu0 %v1566
    %1630 = vmatprep.subr.mxu0 %v1571
    %1631 = vmatpush1.msra.mxu0 %v1570
    %1632 = vmatprep.subr.mxu0 %v1575
    %1633 = vmatpush1.msra.mxu0 %v1574
    %1634 = vmatprep.subr.mxu0 %v1579
    %1635 = vmatpush1.msra.mxu0 %v1578
    %1636 = vmatprep.subr.mxu0 %v1583
    %1637 = vmatpush1.msra.mxu0 %v1582
    %1638 = vmatprep.subr.mxu0 %v1587
    %1639 = vmatpush1.msra.mxu0 %v1586
    %1640 = vmatprep.subr.mxu0 %v1591
    %1641 = vmatpush1.msra.mxu0 %v1590
    %1642 = vmatprep.subr.mxu0 %v1595
    %1643 = vmatpush1.msra.mxu0 %v1594
    %1644 = vmatprep.subr.mxu0 %v1599
    %1645 = vmatpush1.msra.mxu0 %v1598
    %1646 = vmatprep.subr.mxu0 %v1603
    %1647 = vmatpush1.msra.mxu0 %v1602
    %1648 = vmatprep.subr.mxu0 %v1607
    %1649 = vmatpush1.msra.mxu0 %v1606
    %1650 = vmatprep.subr.mxu0 %v1611
    %1651 = vmatpush1.msra.mxu0 %v1610
    %1652 = vmatprep.subr.mxu0 %v1615
    %1653 = vmatpush1.msra.mxu0 %v1614
    %1654 = vmatprep.subr.mxu0 %v1619
    %1655 = vmatpush1.msra.mxu0 %v1618
    %1656 = vmatprep.subr.mxu0 %v1623
    %1657 = vmatpush1.msra.mxu0 %v1622
    %1658 = vmatprep.subr.mxu0 0.0
    %1659 = vmatpush1.msra.mxu0 0.0
    %1660 = vmatprep.subr.mxu0 0.0
    %1661 = vmatpush1.msra.mxu0 0.0
    %1662 = vmatprep.subr.mxu0 0.0
    %1663 = vmatpush1.msra.mxu0 0.0
    %1664 = vmatprep.subr.mxu0 0.0
    %1665 = vmatpush1.msra.mxu0 0.0
    %1666 = vmatprep.subr.mxu0 0.0
    %1667 = vmatpush1.msra.mxu0 0.0
    %1668 = vmatprep.subr.mxu0 0.0
    %1669 = vmatpush1.msra.mxu0 0.0
    %1670 = vmatprep.subr.mxu0 0.0
    %1671 = vmatpush1.msra.mxu0 0.0
    %1672 = vmatprep.subr.mxu0 0.0
    %1673 = vmatpush1.msra.mxu0 0.0
    %1674 = vmatprep.subr.mxu0 0.0
    %1675 = vmatpush1.msra.mxu0 0.0
    %1676 = vmatprep.subr.mxu0 0.0
    %1677 = vmatpush1.msra.mxu0 0.0
    %1678 = vmatprep.subr.mxu0 0.0
    %1679 = vmatpush1.msra.mxu0 0.0
    %1680 = vmatprep.subr.mxu0 0.0
    %1681 = vmatpush1.msra.mxu0 0.0
    %1682 = vmatprep.subr.mxu0 0.0
    %1683 = vmatpush1.msra.mxu0 0.0
    %1684 = vmatprep.subr.mxu0 0.0
    %1685 = vmatpush1.msra.mxu0 0.0
    %1686 = vmatprep.subr.mxu0 0.0
    %1687 = vmatpush1.msra.mxu0 0.0
    %1688 = vmatprep.subr.mxu0 0.0
    %1689 = vmatpush1.msra.mxu0 0.0
    %1690 = vmatprep.mubr.f32.mxu0 0.0
    %1691 = vmatmul.mubr.f32.gmra.mrb[0].mxu0 %v1560
    %v1692 = vpop.f32.mrb[0].mxu0
    %v1693 = vadd.f32 0.0, %v1692
    %v1694 = vpop.f32.mrb[0].mxu0
    %v1695 = vadd.f32 0.0, %v1694
    %1696 = vmatprep.mubr.f32.mxu0 0.0
    %1697 = vmatmul.mubr.f32.gmra.mrb[0].mxu0 %v1561
    %v1698 = vpop.f32.mrb[0].mxu0
    %v1699 = vadd.f32 0.0, %v1698
    %v1700 = vpop.f32.mrb[0].mxu0
    %v1701 = vadd.f32 0.0, %v1700
    %1702 = vdwg.mxu0
    %1703 = vmatprep.subr.mxu0 %v1565
    %1704 = vmatpush1.msra.mxu0 %v1564
    %1705 = vmatprep.subr.mxu0 %v1569
    %1706 = vmatpush1.msra.mxu0 %v1568
    %1707 = vmatprep.subr.mxu0 %v1573
    %1708 = vmatpush1.msra.mxu0 %v1572
    %1709 = vmatprep.subr.mxu0 %v1577
    %1710 = vmatpush1.msra.mxu0 %v1576
    %1711 = vmatprep.subr.mxu0 %v1581
    %1712 = vmatpush1.msra.mxu0 %v1580
    %1713 = vmatprep.subr.mxu0 %v1585
    %1714 = vmatpush1.msra.mxu0 %v1584
    %1715 = vmatprep.subr.mxu0 %v1589
    %1716 = vmatpush1.msra.mxu0 %v1588
    %1717 = vmatprep.subr.mxu0 %v1593
    %1718 = vmatpush1.msra.mxu0 %v1592
    %1719 = vmatprep.subr.mxu0 %v1597
    %1720 = vmatpush1.msra.mxu0 %v1596
    %1721 = vmatprep.subr.mxu0 %v1601
    %1722 = vmatpush1.msra.mxu0 %v1600
    %1723 = vmatprep.subr.mxu0 %v1605
    %1724 = vmatpush1.msra.mxu0 %v1604
    %1725 = vmatprep.subr.mxu0 %v1609
    %1726 = vmatpush1.msra.mxu0 %v1608
    %1727 = vmatprep.subr.mxu0 %v1613
    %1728 = vmatpush1.msra.mxu0 %v1612
    %1729 = vmatprep.subr.mxu0 %v1617
    %1730 = vmatpush1.msra.mxu0 %v1616
    %1731 = vmatprep.subr.mxu0 %v1621
    %1732 = vmatpush1.msra.mxu0 %v1620
    %1733 = vmatprep.subr.mxu0 %v1625
    %1734 = vmatpush1.msra.mxu0 %v1624
    %1735 = vmatprep.subr.mxu0 0.0
    %1736 = vmatpush1.msra.mxu0 0.0
    %1737 = vmatprep.subr.mxu0 0.0
    %1738 = vmatpush1.msra.mxu0 0.0
    %1739 = vmatprep.subr.mxu0 0.0
    %1740 = vmatpush1.msra.mxu0 0.0
    %1741 = vmatprep.subr.mxu0 0.0
    %1742 = vmatpush1.msra.mxu0 0.0
    %1743 = vmatprep.subr.mxu0 0.0
    %1744 = vmatpush1.msra.mxu0 0.0
    %1745 = vmatprep.subr.mxu0 0.0
    %1746 = vmatpush1.msra.mxu0 0.0
    %1747 = vmatprep.subr.mxu0 0.0
    %1748 = vmatpush1.msra.mxu0 0.0
    %1749 = vmatprep.subr.mxu0 0.0
    %1750 = vmatpush1.msra.mxu0 0.0
    %1751 = vmatprep.subr.mxu0 0.0
    %1752 = vmatpush1.msra.mxu0 0.0
    %1753 = vmatprep.subr.mxu0 0.0
    %1754 = vmatpush1.msra.mxu0 0.0
    %1755 = vmatprep.subr.mxu0 0.0
    %1756 = vmatpush1.msra.mxu0 0.0
    %1757 = vmatprep.subr.mxu0 0.0
    %1758 = vmatpush1.msra.mxu0 0.0
    %1759 = vmatprep.subr.mxu0 0.0
    %1760 = vmatpush1.msra.mxu0 0.0
    %1761 = vmatprep.subr.mxu0 0.0
    %1762 = vmatpush1.msra.mxu0 0.0
    %1763 = vmatprep.subr.mxu0 0.0
    %1764 = vmatpush1.msra.mxu0 0.0
    %1765 = vmatprep.subr.mxu0 0.0
    %1766 = vmatpush1.msra.mxu0 0.0
    %1767 = vmatprep.mubr.f32.mxu0 0.0
    %1768 = vmatmul.mubr.f32.gmra.mrb[0].mxu0 %v1560
    %v1769 = vpop.f32.mrb[0].mxu0
    %v1770 = vadd.f32 0.0, %v1769
    %v1771 = vpop.f32.mrb[0].mxu0
    %v1772 = vadd.f32 0.0, %v1771
    %1773 = vmatprep.mubr.f32.mxu0 0.0
    %1774 = vmatmul.mubr.f32.gmra.mrb[0].mxu0 %v1561
    %v1775 = vpop.f32.mrb[0].mxu0
    %v1776 = vadd.f32 0.0, %v1775
    %v1777 = vpop.f32.mrb[0].mxu0
    %v1778 = vadd.f32 0.0, %v1777
    %1779 = vdwg.mxu0
    %v1780 = vxor.u32 %v1693, 2147483648
    %v1781 = vxor.u32 %v1695, 2147483648
    %v1782 = vxor.u32 %v1699, 2147483648
    %v1783 = vxor.u32 %v1701, 2147483648
    %v1784 = vmul.f32 %v1780, 1.442695
    %v1785 = vpow.pop %v1784
    %v1786 = vmul.f32 %v1781, 1.442695
    %v1787 = vpow.pop %v1786
    %v1788 = vmul.f32 %v1782, 1.442695
    %v1789 = vpow.pop %v1788
    %v1790 = vmul.f32 %v1783, 1.442695
    %v1791 = vpow.pop %v1790
    %v1792 = vadd.f32 %v1785, 1.0
    %v1793 = vadd.f32 %v1787, 1.0
    %v1794 = vadd.f32 %v1789, 1.0
    %v1795 = vadd.f32 %v1791, 1.0
    %v1796 = vrcp.pop %v1792
    %v1797 = vmul.f32 1.0, %v1796
    %v1798 = vrcp.pop %v1793
    %v1799 = vmul.f32 1.0, %v1798
    %v1800 = vrcp.pop %v1794
    %v1801 = vmul.f32 1.0, %v1800
    %v1802 = vrcp.pop %v1795
    %v1803 = vmul.f32 1.0, %v1802
    %v1804 = vmul.f32 %v1693, %v1797
    %v1805 = vmul.f32 %v1695, %v1799
    %v1806 = vmul.f32 %v1699, %v1801
    %v1807 = vmul.f32 %v1701, %v1803
    %v1808 = vmul.f32 %v1804, %v1770
    %v1809 = vmul.f32 %v1805, %v1772
    %v1810 = vmul.f32 %v1806, %v1776
    %v1811 = vmul.f32 %v1807, %v1778
    %v1812 = vld [vmem:[#allocation14] sm:$0xff]
    %v1813 = vld [vmem:[#allocation14 + $0x8] sm:$0xff]
    %v1814 = vld [vmem:[#allocation14 + $0x10] sm:$0xff]
    %v1815 = vld [vmem:[#allocation14 + $0x18] sm:$0xff]
    %v1816 = vld [vmem:[#allocation14 + $0x20] sm:$0xff]
    %v1817 = vld [vmem:[#allocation14 + $0x28] sm:$0xff]
    %v1818 = vld [vmem:[#allocation14 + $0x30] sm:$0xff]
    %v1819 = vld [vmem:[#allocation14 + $0x38] sm:$0xff]
    %v1820 = vld [vmem:[#allocation14 + $0x40] sm:$0xff]
    %v1821 = vld [vmem:[#allocation14 + $0x48] sm:$0xff]
    %v1822 = vld [vmem:[#allocation14 + $0x50] sm:$0xff]
    %v1823 = vld [vmem:[#allocation14 + $0x58] sm:$0xff]
    %v1824 = vld [vmem:[#allocation14 + $0x60] sm:$0xff]
    %v1825 = vld [vmem:[#allocation14 + $0x68] sm:$0xff]
    %v1826 = vld [vmem:[#allocation14 + $0x70] sm:$0xff]
    %v1827 = vld [vmem:[#allocation14 + $0x78] sm:$0xff]
    %v1828 = vld [vmem:[#allocation14 + $0x80] sm:$0xff]
    %v1829 = vld [vmem:[#allocation14 + $0x88] sm:$0xff]
    %v1830 = vld [vmem:[#allocation14 + $0x90] sm:$0xff]
    %v1831 = vld [vmem:[#allocation14 + $0x98] sm:$0xff]
    %v1832 = vld [vmem:[#allocation14 + $0xa0] sm:$0xff]
    %v1833 = vld [vmem:[#allocation14 + $0xa8] sm:$0xff]
    %v1834 = vld [vmem:[#allocation14 + $0xb0] sm:$0xff]
    %v1835 = vld [vmem:[#allocation14 + $0xb8] sm:$0xff]
    %v1836 = vld [vmem:[#allocation14 + $0xc0] sm:$0xff]
    %v1837 = vld [vmem:[#allocation14 + $0xc8] sm:$0xff]
    %v1838 = vld [vmem:[#allocation14 + $0xd0] sm:$0xff]
    %v1839 = vld [vmem:[#allocation14 + $0xd8] sm:$0xff]
    %v1840 = vld [vmem:[#allocation14 + $0xe0] sm:$0xff]
    %v1841 = vld [vmem:[#allocation14 + $0xe8] sm:$0xff]
    %v1842 = vld [vmem:[#allocation14 + $0xf0] sm:$0xff]
    %v1843 = vld [vmem:[#allocation14 + $0xf8] sm:$0xff]
    %1844 = vmatprep.subr.mxu0 0.0
    %1845 = vmatpush1.msra.mxu0 %v1812
    %1846 = vmatprep.subr.mxu0 0.0
    %1847 = vmatpush1.msra.mxu0 %v1813
    %1848 = vmatprep.subr.mxu0 0.0
    %1849 = vmatpush1.msra.mxu0 %v1814
    %1850 = vmatprep.subr.mxu0 0.0
    %1851 = vmatpush1.msra.mxu0 %v1815
    %1852 = vmatprep.subr.mxu0 0.0
    %1853 = vmatpush1.msra.mxu0 %v1816
    %1854 = vmatprep.subr.mxu0 0.0
    %1855 = vmatpush1.msra.mxu0 %v1817
    %1856 = vmatprep.subr.mxu0 0.0
    %1857 = vmatpush1.msra.mxu0 %v1818
    %1858 = vmatprep.subr.mxu0 0.0
    %1859 = vmatpush1.msra.mxu0 %v1819
    %1860 = vmatprep.subr.mxu0 0.0
    %1861 = vmatpush1.msra.mxu0 %v1820
    %1862 = vmatprep.subr.mxu0 0.0
    %1863 = vmatpush1.msra.mxu0 %v1821
    %1864 = vmatprep.subr.mxu0 0.0
    %1865 = vmatpush1.msra.mxu0 %v1822
    %1866 = vmatprep.subr.mxu0 0.0
    %1867 = vmatpush1.msra.mxu0 %v1823
    %1868 = vmatprep.subr.mxu0 0.0
    %1869 = vmatpush1.msra.mxu0 %v1824
    %1870 = vmatprep.subr.mxu0 0.0
    %1871 = vmatpush1.msra.mxu0 %v1825
    %1872 = vmatprep.subr.mxu0 0.0
    %1873 = vmatpush1.msra.mxu0 %v1826
    %1874 = vmatprep.subr.mxu0 0.0
    %1875 = vmatpush1.msra.mxu0 %v1827
    %1876 = vmatprep.subr.mxu0 0.0
    %1877 = vmatpush1.msra.mxu0 %v1828
    %1878 = vmatprep.subr.mxu0 0.0
    %1879 = vmatpush1.msra.mxu0 %v1829
    %1880 = vmatprep.subr.mxu0 0.0
    %1881 = vmatpush1.msra.mxu0 %v1830
    %1882 = vmatprep.subr.mxu0 0.0
    %1883 = vmatpush1.msra.mxu0 %v1831
    %1884 = vmatprep.subr.mxu0 0.0
    %1885 = vmatpush1.msra.mxu0 %v1832
    %1886 = vmatprep.subr.mxu0 0.0
    %1887 = vmatpush1.msra.mxu0 %v1833
    %1888 = vmatprep.subr.mxu0 0.0
    %1889 = vmatpush1.msra.mxu0 %v1834
    %1890 = vmatprep.subr.mxu0 0.0
    %1891 = vmatpush1.msra.mxu0 %v1835
    %1892 = vmatprep.subr.mxu0 0.0
    %1893 = vmatpush1.msra.mxu0 %v1836
    %1894 = vmatprep.subr.mxu0 0.0
    %1895 = vmatpush1.msra.mxu0 %v1837
    %1896 = vmatprep.subr.mxu0 0.0
    %1897 = vmatpush1.msra.mxu0 %v1838
    %1898 = vmatprep.subr.mxu0 0.0
    %1899 = vmatpush1.msra.mxu0 %v1839
    %1900 = vmatprep.subr.mxu0 0.0
    %1901 = vmatpush1.msra.mxu0 %v1840
    %1902 = vmatprep.subr.mxu0 0.0
    %1903 = vmatpush1.msra.mxu0 %v1841
    %1904 = vmatprep.subr.mxu0 0.0
    %1905 = vmatpush1.msra.mxu0 %v1842
    %1906 = vmatprep.subr.mxu0 0.0
    %1907 = vmatpush1.msra.mxu0 %v1843
    %1908 = vmatprep.mubr.f32.mxu0 %v1809
    %1909 = vmatmul.mubr.f32.gmra.mrb[0].mxu0 %v1808
    %v1910 = vpop.f32.mrb[0].mxu0
    %v1911 = vadd.f32 0.0, %v1910
    %v1912 = vpop.f32.mrb[0].mxu0
    %1913 = vmatprep.mubr.f32.mxu0 %v1811
    %1914 = vmatmul.mubr.f32.gmra.mrb[0].mxu0 %v1810
    %v1915 = vpop.f32.mrb[0].mxu0
    %v1916 = vadd.f32 0.0, %v1915
    %v1917 = vpop.f32.mrb[0].mxu0
    %1918 = vdwg.mxu0
    %v1919 = vmul.f32 %v1911, 0.22
    %v1920 = vmul.f32 %v1916, 0.22
    %1921 = vst [vmem:[#allocation16] sm:$0xff] %v1919
    %1922 = vst [vmem:[#allocation16 + $0x8] sm:$0xff] %v1920
    // Predicated region
    $region74: #{tpu_custom_call.1} parent=1 // pred_check
      _
    $region75: #{tpu_custom_call.1} parent=1 // pred_check_branch
      %1924 = sbr.rel (0) target = $region77
    $region76: #{tpu_custom_call.1} parent=1 // pred_region
      %s1926 = ssub.s32 256, 256
      %1927 = vsyncadd [#allocation4], %s1926
      %s1928 = sshll.u32 [#allocation16], 4
      %s1929 = int_to_ptr.vmem [resolvable:$true] %s1928
      %1934 = dma.vmem_to_hbm [thread:$0]  %s1929, 256, %s10, [#allocation4], 128, 128, 8
    $region77: #{tpu_custom_call.1} parent=1 // pred_fallthru
      _
    // Predicated region
    $region78: #{tpu_custom_call.1} parent=1 // pred_check
      _
    $region79: #{tpu_custom_call.1} parent=1 // pred_check_branch
      %1936 = sbr.rel (0) target = $region81
    $region80: #{tpu_custom_call.1} parent=1 // pred_region
      %s1938 = ssub.s32 256, 256
      %1939 = vsyncadd [#allocation18], %s1938
      %s1940 = sshll.u32 [#allocation17], 4
      %s1941 = int_to_ptr.vmem [resolvable:$true] %s1940
      %1946 = dma.vmem_to_hbm [thread:$0]  %s1941, 256, %s11, [#allocation18], 128, 128, 8
    $region81: #{tpu_custom_call.1} parent=1 // pred_fallthru
      _
    // Predicated region
    $region82: #{tpu_custom_call.1} parent=1 // pred_check
      _
    $region83: #{tpu_custom_call.1} parent=1 // pred_check_branch
      %1948 = sbr.rel (0) target = $region85
    $region84: #{tpu_custom_call.1} parent=1 // pred_region
      %1949 = dma.done [#allocation4], 256
    $region85: #{tpu_custom_call.1} parent=1 // pred_fallthru
      _
    // Predicated region
    $region86: #{tpu_custom_call.1} parent=1 // pred_check
      _
    $region87: #{tpu_custom_call.1} parent=1 // pred_check_branch
      %1951 = sbr.rel (0) target = $region89
    $region88: #{tpu_custom_call.1} parent=1 // pred_region
      %1952 = dma.done [#allocation18], 256
    $region89: #{tpu_custom_call.1} parent=1 // pred_fallthru
      _
    %1953 = vsyncpa [#allocation3], 1
    %1954 = vsyncpa [#allocation6], 1
    %1955 = vsyncpa [#allocation9], 1
    %1956 = vsyncpa [#allocation12], 1
    %1957 = vsyncpa [#allocation15], 1
    %1958 = vsyncpa [#allocation4], 1
    %1959 = vsyncpa [#allocation18], 1

</llo_original>
